<compile_context>
chip_gen: v7x
topology: tpu7x:2x2x1
jax: 0.10.0
libtpu: 0.0.40
codegen_flags: <defaults>
</compile_context>

<pallas_src>
import jax
import jax.numpy as jnp
from jax.experimental import pallas as pl
from jax.experimental.pallas import tpu as pltpu


def make_kernel(C_in, C_bn, C_out, C_red, K, DIL, PAD, T, BBLK, NSEG, mxu_dtype):
    BT = BBLK * T

    def kernel(x_ref, vecs_ref, w1_ref, wl_ref, wc1_ref, wc2_ref,
               pool_ref, unpool_ref, mask_ref, o_ref):
        x = x_ref[...].astype(jnp.float32)                    # (C_in, BT)

        # Packed per-channel vectors (columns of one small VMEM array), kept f32.
        s1 = vecs_ref[:C_in, 0:1]
        b1 = vecs_ref[:C_in, 1:2]
        b2 = vecs_ref[:C_bn, 2:3]
        bc1 = vecs_ref[:C_red, 3:4]
        bc2 = vecs_ref[:C_out, 4:5]

        # ---- nonlinear1: folded BatchNorm1d + ReLU (f32 elementwise) ----
        x1 = jnp.maximum(x * s1 + b1, 0.0)

        # ---- linear1 (1x1 conv, BN2 scale folded into rows) + BN2 shift + ReLU ----
        # w1_ref is already in mxu_dtype; only the activation is cast at the dot.
        h2 = jnp.maximum(
            jnp.dot(w1_ref[...], x1.astype(mxu_dtype),
                    preferred_element_type=jnp.float32) + b2,
            0.0)                                              # (C_bn, BT) f32
        h2m = h2.astype(mxu_dtype)                            # cast once, reused below

        # ==== CAMLayer ====
        # linear_local: dilated "same" conv as ONE im2col matmul (contraction K*C_bn).
        # Shifted views come from XLU rolls (f32); the precomputed per-tap mask zeroes
        # edge columns and cross-batch wrap-around in the lane dim (f32 VPU multiply),
        # then each view is cast so the stacked buffer is materialized once in
        # mxu_dtype.
        # NOTE: on v7x one could instead accumulate K per-tap dots in the MRB and drop
        # `stacked`; kept as a single im2col matmul (better on v5e/v6e's MRF).
        views = []
        for j in range(K):
            off = j * DIL - PAD
            if off == 0:
                views.append(h2m)
            else:
                v = pltpu.roll(h2, shift=(-off) % BT, axis=1)
                views.append((v * mask_ref[j:j + 1, :]).astype(mxu_dtype))
        stacked = jnp.concatenate(views, axis=0)              # (K*C_bn, BT) mxu_dtype
        y = jnp.dot(wl_ref[...], stacked,
                    preferred_element_type=jnp.float32)       # (C_out, BT) f32

        # Context is piecewise-constant per segment -> compute the attention mask at
        # segment granularity only, per lane-flattened batch block (pool/unpool are
        # (T,NSEG)/(NSEG,T); no BBLK^2 block-diagonal matrices).  pool folds in the
        # global time-mean term and the 1/segment-length reciprocals.
        for b in range(BBLK):
            lo, hi = b * T, (b + 1) * T
            ctx = jnp.dot(h2m[:, lo:hi], pool_ref[...],
                          preferred_element_type=jnp.float32)          # (C_bn, NSEG)
            c1 = jnp.maximum(
                jnp.dot(wc1_ref[...], ctx.astype(mxu_dtype),
                        preferred_element_type=jnp.float32) + bc1, 0.0)
            m_seg = jax.nn.sigmoid(
                jnp.dot(wc2_ref[...], c1.astype(mxu_dtype),
                        preferred_element_type=jnp.float32) + bc2)     # (C_out, NSEG)
            # Exact broadcast of the per-segment mask back to every time step.
            m = jnp.dot(m_seg.astype(mxu_dtype), unpool_ref[...],
                        preferred_element_type=jnp.float32)            # (C_out, T)
            o_ref[:, lo:hi] = (y[:, lo:hi] * m).astype(o_ref.dtype)

    return kernel


def cam_dense_tdnn_layer(x, p, *, kernel_size, dilation, seg_len=100,
                         batch_block=1, mxu_dtype=jnp.bfloat16,
                         vmem_limit_bytes="auto"):
    """Fused CAMDenseTDNNLayer forward (inference-mode BN).

    batch_block: batch elements flattened into the lane axis per grid step.
      * v7x (2 TensorCores): keep NB = B/batch_block >= 2 so the parallel batch grid
        axis shards across both cores.
      * v5e/v6e (1 TensorCore): make batch_block as large as VMEM allows — one wide
        lane-flattened step amortizes per-step overhead and fills the MXU N dim.
    mxu_dtype: operand dtype for the matmuls (bf16 matches the native MXU datapath on
      v6e/v7x; accumulation is always f32).  Use jnp.float32 for bit-tight checks.
    vmem_limit_bytes: "auto" raises the scoped VMEM limit when the estimated per-step
      footprint exceeds the default; pass an int to override, None to leave default.
    In production wrap this function with jax.jit (static kwargs) so the constant
    construction below is cached per shape instead of re-run per call.
    """
    B, C_in, T = x.shape
    C_bn, _ = p["w1"].shape
    K, C_out, _ = p["wl"].shape
    C_red = p["wc1"].shape[0]
    assert kernel_size % 2 == 1
    assert B % batch_block == 0
    PAD = (kernel_size - 1) // 2 * dilation
    NSEG = -(-T // seg_len)                      # ceil, matches avg_pool1d(ceil_mode=True)
    BBLK = batch_block
    NB = B // BBLK
    BT = BBLK * T
    f32 = jnp.float32

    # ---- grid-invariant constants / folded params (computed once, pre-cast) ----
    # Fold BN2 scale into linear1's weight rows; keep BN2 shift as post-matmul bias.
    w1f = (p["s2"] * p["w1"]).astype(mxu_dtype)                          # (C_bn, C_in)
    # im2col weight: (C_out, K*C_bn), tap-major columns.
    wl_flat = jnp.transpose(p["wl"], (1, 0, 2)).reshape(C_out, K * C_bn).astype(mxu_dtype)
    wc1 = p["wc1"].astype(mxu_dtype)
    wc2 = p["wc2"].astype(mxu_dtype)

    # Pack the small per-channel vectors into one f32 array (fewer DMA'd inputs).
    C_max = max(C_in, C_bn, C_red, C_out)

    def padcol(v, c):
        return jnp.pad(v.reshape(-1).astype(f32), (0, C_max - c))

    vecs = jnp.stack([padcol(p["s1"], C_in), padcol(p["b1"], C_in),
                      padcol(p["b2"], C_bn), padcol(p["bc1"], C_red),
                      padcol(p["bc2"], C_out)], axis=1)                   # (C_max, 5)

    # Per-batch-block segment pooling matrices (ceil-mode avg pool with true element
    # counts for the partial last segment, matching F.avg_pool1d(ceil_mode=True)),
    # with the global time-mean term and the 1/count reciprocals folded in.
    seg_id = jnp.arange(T) // seg_len
    onehot = (seg_id[:, None] == jnp.arange(NSEG)[None, :]).astype(f32)   # (T, NSEG)
    counts = onehot.sum(0)
    pool = (onehot / counts[None, :] + (1.0 / T)).astype(mxu_dtype)       # (T, NSEG)
    unpool = onehot.T.astype(mxu_dtype)                                   # (NSEG, T)

    # Per-tap validity masks for the rolled views (also masks cross-batch wrap-around
    # in the lane-flattened layout).  Kept f32 (mask multiply runs on the f32 VPU).
    tloc = jnp.tile(jnp.arange(T), BBLK)
    offs = jnp.arange(K)[:, None] * dilation - PAD
    tapmask = ((tloc[None, :] + offs >= 0) &
               (tloc[None, :] + offs < T)).astype(f32)                    # (K, BT)

    # Lane-flatten batch blocks: (NB, C_in, BBLK*T). A pure reshape when BBLK == 1.
    xb = x.reshape(NB, BBLK, C_in, T).transpose(0, 2, 1, 3).reshape(NB, C_in, BT)

    kernel = make_kernel(C_in, C_bn, C_out, C_red, K, dilation, PAD, T, BBLK, NSEG,
                         mxu_dtype)

    # ---- rough per-step VMEM estimate -> raise scoped limit only when needed ----
    mb = jnp.dtype(mxu_dtype).itemsize
    xbytes = jnp.dtype(x.dtype).itemsize
    const_bytes = (vecs.size * 4 + w1f.size * mb + wl_flat.size * mb + wc1.size * mb +
                   wc2.size * mb + pool.size * mb + unpool.size * mb + tapmask.size * 4)
    est = (2 * C_in * BT * xbytes            # x block (double-buffered)
           + 2 * C_out * BT * xbytes         # output block (double-buffered)
           + const_bytes                     # grid-invariant inputs
           + C_bn * BT * (4 + mb)            # h2 (f32) + h2m
           + K * C_bn * BT * mb              # stacked im2col buffer
           + C_out * BT * 8                  # y + gate temporaries
           + 2 * C_bn * BT * 4)              # rolled-view headroom
    if vmem_limit_bytes == "auto":
        vmem_limit_bytes = None if est < (12 << 20) else min(int(est * 1.5), 96 << 20)

    def run(single_buffer_consts):
        # Grid-invariant inputs (constant index_map) gain nothing from double
        # buffering; request a single buffer so the VMEM goes to a wider batch_block.
        const_kw = {"pipeline_mode": pl.Buffered(1)} if single_buffer_consts else {}

        def full(shape):
            n = len(shape)
            return pl.BlockSpec(shape, lambda b, _n=n: (0,) * _n, **const_kw)

        grid_spec = pltpu.PrefetchScalarGridSpec(
            num_scalar_prefetch=0,
            grid=(NB,),
            in_specs=[
                pl.BlockSpec((pl.Squeezed(), C_in, BT), lambda b: (b, 0, 0)),  # x block
                full((C_max, 5)),                 # packed s1,b1,b2,bc1,bc2 (f32)
                full((C_bn, C_in)),               # linear1 weight (BN2 scale folded)
                full((C_out, K * C_bn)),          # im2col linear_local weight
                full((C_red, C_bn)),              # cam linear1 weight
                full((C_out, C_red)),             # cam linear2 weight
                full((T, NSEG)),                  # pooling matrix (mean + seg-avg folded)
                full((NSEG, T)),                  # one-hot unpool matrix
                full((K, BT)),                    # per-tap edge masks (f32)
            ],
            out_specs=pl.BlockSpec((pl.Squeezed(), C_out, BT), lambda b: (b, 0, 0)),
        )
        cp_kwargs = dict(dimension_semantics=("parallel",))
        if vmem_limit_bytes is not None:
            cp_kwargs["vmem_limit_bytes"] = int(vmem_limit_bytes)
        return pl.pallas_call(
            kernel,
            out_shape=jax.ShapeDtypeStruct((NB, C_out, BT), x.dtype),
            grid_spec=grid_spec,
            compiler_params=pltpu.CompilerParams(**cp_kwargs),
        )(xb, vecs, w1f, wl_flat, wc1, wc2, pool, unpool, tapmask)

    try:
        out = run(single_buffer_consts=True)
    except Exception:
        # Fallback for jax versions that reject single-buffered (Buffered(1)) inputs.
        out = run(single_buffer_consts=False)

    return out.reshape(NB, C_out, BBLK, T).transpose(0, 2, 1, 3).reshape(B, C_out, T)


def init_params(key, in_ch, bn_ch, out_ch, kernel_size, reduction=2):
    keys = jax.random.split(key, 12)

    def bn_fold(kg, kb, km, kv, c):
        gamma = 1.0 + 0.1 * jax.random.normal(kg, (c,), jnp.float32)
        beta = 0.1 * jax.random.normal(kb, (c,), jnp.float32)
        rmean = 0.1 * jax.random.normal(km, (c,), jnp.float32)
        rvar = jnp.abs(jax.random.normal(kv, (c,), jnp.float32)) + 0.5
        scale = gamma / jnp.sqrt(rvar + 1e-5)
        shift = beta - rmean * scale
        return scale.reshape(c, 1), shift.reshape(c, 1)

    s1, b1 = bn_fold(keys[0], keys[1], keys[2], keys[3], in_ch)
    s2, b2 = bn_fold(keys[4], keys[5], keys[6], keys[7], bn_ch)
    w1 = 0.1 * jax.random.normal(keys[8], (bn_ch, in_ch), jnp.float32)
    wl = 0.1 * jax.random.normal(keys[9], (kernel_size, out_ch, bn_ch), jnp.float32)
    red = bn_ch // reduction
    ka, kb_ = jax.random.split(keys[10])
    wc1 = 0.1 * jax.random.normal(ka, (red, bn_ch), jnp.float32)
    bc1 = 0.1 * jax.random.normal(kb_, (red, 1), jnp.float32)
    kc, kd = jax.random.split(keys[11])
    wc2 = 0.1 * jax.random.normal(kc, (out_ch, red), jnp.float32)
    bc2 = 0.1 * jax.random.normal(kd, (out_ch, 1), jnp.float32)
    return dict(s1=s1, b1=b1, w1=w1, s2=s2, b2=b2, wl=wl,
                wc1=wc1, bc1=bc1, wc2=wc2, bc2=bc2)


def reference(x, p, *, kernel_size, dilation, seg_len=100):
    """Pure-JAX reference mirroring the PyTorch forward (inference-mode BN)."""
    B, C_in, T = x.shape
    K, d = kernel_size, dilation
    pad = (K - 1) // 2 * d
    x1 = jnp.maximum(x * p["s1"][None] + p["b1"][None], 0.0)
    h = jnp.einsum("oc,bct->bot", p["w1"], x1)
    h2 = jnp.maximum(h * p["s2"][None] + p["b2"][None], 0.0)
    hp = jnp.pad(h2, ((0, 0), (0, 0), (pad, pad)))
    y = sum(jnp.einsum("oc,bct->bot", p["wl"][j], hp[:, :, j * d:j * d + T])
            for j in range(K))
    mean_t = h2.mean(-1, keepdims=True)
    nseg = -(-T // seg_len)
    seg_id = jnp.arange(T) // seg_len
    onehot = (seg_id[:, None] == jnp.arange(nseg)[None, :]).astype(jnp.float32)
    counts = onehot.sum(0)
    seg_mean = jnp.einsum("bct,ts->bcs", h2, onehot) / counts
    seg_back = jnp.einsum("bcs,ts->bct", seg_mean, onehot)
    context = mean_t + seg_back
    c1 = jnp.maximum(jnp.einsum("rc,bct->brt", p["wc1"], context) + p["bc1"][None], 0.0)
    m = jax.nn.sigmoid(jnp.einsum("or,brt->bot", p["wc2"], c1) + p["bc2"][None])
    return y * m


if __name__ == "__main__":
    B, in_ch, bn_ch, out_ch, T = 2, 16, 32, 16, 256
    kernel_size, dilation = 3, 2

    key = jax.random.PRNGKey(0)
    kx, kp = jax.random.split(key)
    x = jax.random.normal(kx, (B, in_ch, T), jnp.float32)
    params = init_params(kp, in_ch, bn_ch, out_ch, kernel_size)

    ref = reference(x, params, kernel_size=kernel_size, dilation=dilation)

    # f32-MXU path: bit-tight check of the fused kernel, both batch layouts
    # (batch_block=1 keeps a parallel batch grid axis for the 2 TCs on v7x;
    #  batch_block=2 lane-flattens the whole batch into one wide grid step).
    for bblk in (1, 2):
        out = cam_dense_tdnn_layer(x, params, kernel_size=kernel_size,
                                   dilation=dilation, batch_block=bblk,
                                   mxu_dtype=jnp.float32)
        out = jax.block_until_ready(out)
        assert out.shape == (B, out_ch, T)
        assert jnp.allclose(out, ref, atol=1e-3, rtol=1e-3), \
            f"f32 mismatch vs JAX reference (batch_block={bblk})"

    # Default bf16-MXU path (native MXU datapath on v6e/v7x, f32 accumulation);
    # tolerance loosened for bf16 operand rounding.
    out_bf16 = jax.block_until_ready(
        cam_dense_tdnn_layer(x, params, kernel_size=kernel_size,
                             dilation=dilation, batch_block=1))
    assert out_bf16.shape == (B, out_ch, T)
    assert jnp.allclose(out_bf16, ref, atol=3e-2, rtol=3e-2), \
        "bf16 mismatch vs JAX reference"

    print("KERNEL_OK")
</pallas_src>

<mosaic_0001>
module attributes {stable_mosaic.version = 11 : i64} {
  func.func @kernel(%arg0: i32, %arg1: memref<1x16x256xf32, #tpu.memory_space<vmem>>, %arg2: memref<32x5xf32, #tpu.memory_space<vmem>>, %arg3: memref<32x16xf32, #tpu.memory_space<vmem>>, %arg4: memref<16x96xf32, #tpu.memory_space<vmem>>, %arg5: memref<16x32xf32, #tpu.memory_space<vmem>>, %arg6: memref<16x16xf32, #tpu.memory_space<vmem>>, %arg7: memref<256x3xf32, #tpu.memory_space<vmem>>, %arg8: memref<3x256xf32, #tpu.memory_space<vmem>>, %arg9: memref<3x256xf32, #tpu.memory_space<vmem>>, %arg10: memref<1x16x256xf32, #tpu.memory_space<vmem>>) attributes {dimension_semantics = [#tpu.dimension_semantics<parallel>], iteration_bounds = array<i64: 2>, scalar_prefetch = 0 : i64, scratch_operands = 0 : i64, tpu.core_type = #tpu.core_type<tc>, window_params = [{transform_indices = @transform_0, window_bounds = array<i64: 1, 16, 256>}, {pipeline_mode = #tpu.pipeline_mode<synchronous>, transform_indices = @transform_1, window_bounds = array<i64: 32, 5>}, {pipeline_mode = #tpu.pipeline_mode<synchronous>, transform_indices = @transform_2, window_bounds = array<i64: 32, 16>}, {pipeline_mode = #tpu.pipeline_mode<synchronous>, transform_indices = @transform_3, window_bounds = array<i64: 16, 96>}, {pipeline_mode = #tpu.pipeline_mode<synchronous>, transform_indices = @transform_4, window_bounds = array<i64: 16, 32>}, {pipeline_mode = #tpu.pipeline_mode<synchronous>, transform_indices = @transform_5, window_bounds = array<i64: 16, 16>}, {pipeline_mode = #tpu.pipeline_mode<synchronous>, transform_indices = @transform_6, window_bounds = array<i64: 256, 3>}, {pipeline_mode = #tpu.pipeline_mode<synchronous>, transform_indices = @transform_7, window_bounds = array<i64: 3, 256>}, {pipeline_mode = #tpu.pipeline_mode<synchronous>, transform_indices = @transform_8, window_bounds = array<i64: 3, 256>}, {transform_indices = @transform_9, window_bounds = array<i64: 1, 16, 256>}]} {
    %c0 = arith.constant 0 : index
    %c0_0 = arith.constant 0 : index
    %c0_1 = arith.constant 0 : index
    %0 = vector.load %arg1[%c0, %c0_0, %c0_1] : memref<1x16x256xf32, #tpu.memory_space<vmem>>, vector<1x16x256xf32>
    %1 = vector.shape_cast %0 : vector<1x16x256xf32> to vector<16x256xf32>
    %c0_2 = arith.constant 0 : index
    %c0_3 = arith.constant 0 : index
    %2 = vector.load %arg2[%c0_2, %c0_3] : memref<32x5xf32, #tpu.memory_space<vmem>>, vector<16x1xf32>
    %c0_4 = arith.constant 0 : index
    %c1 = arith.constant 1 : index
    %3 = vector.load %arg2[%c0_4, %c1] : memref<32x5xf32, #tpu.memory_space<vmem>>, vector<16x1xf32>
    %c0_5 = arith.constant 0 : index
    %c2 = arith.constant 2 : index
    %4 = vector.load %arg2[%c0_5, %c2] : memref<32x5xf32, #tpu.memory_space<vmem>>, vector<32x1xf32>
    %c0_6 = arith.constant 0 : index
    %c3 = arith.constant 3 : index
    %5 = vector.load %arg2[%c0_6, %c3] : memref<32x5xf32, #tpu.memory_space<vmem>>, vector<16x1xf32>
    %c0_7 = arith.constant 0 : index
    %c4 = arith.constant 4 : index
    %6 = vector.load %arg2[%c0_7, %c4] : memref<32x5xf32, #tpu.memory_space<vmem>>, vector<16x1xf32>
    %7 = vector.broadcast %2 : vector<16x1xf32> to vector<16x256xf32>
    %8 = arith.mulf %1, %7 : vector<16x256xf32>
    %9 = vector.broadcast %3 : vector<16x1xf32> to vector<16x256xf32>
    %10 = arith.addf %8, %9 : vector<16x256xf32>
    %cst = arith.constant 0.000000e+00 : f32
    %11 = vector.broadcast %cst : f32 to vector<16x256xf32>
    %12 = arith.maximumf %10, %11 : vector<16x256xf32>
    %c0_8 = arith.constant 0 : index
    %c0_9 = arith.constant 0 : index
    %13 = vector.load %arg3[%c0_8, %c0_9] : memref<32x16xf32, #tpu.memory_space<vmem>>, vector<32x16xf32>
    %cst_10 = arith.constant dense<0.000000e+00> : vector<32x256xf32>
    %14 = tpu.matmul %13, %12, %cst_10 {dimension_numbers = #tpu.dot_dimension_numbers<[1], [0], [0], [1], [0, 0, 1, 1], [], []>} : vector<32x16xf32>, vector<16x256xf32>, vector<32x256xf32> -> vector<32x256xf32>
    %15 = vector.broadcast %4 : vector<32x1xf32> to vector<32x256xf32>
    %16 = arith.addf %14, %15 : vector<32x256xf32>
    %cst_11 = arith.constant 0.000000e+00 : f32
    %17 = vector.broadcast %cst_11 : f32 to vector<32x256xf32>
    %18 = arith.maximumf %16, %17 : vector<32x256xf32>
    %c2_i32 = arith.constant 2 : i32
    %19 = tpu.dynamic_rotate %18 by %c2_i32 dim 1 : vector<32x256xf32>, i32 -> vector<32x256xf32>
    %c0_12 = arith.constant 0 : index
    %c0_13 = arith.constant 0 : index
    %20 = vector.load %arg9[%c0_12, %c0_13] : memref<3x256xf32, #tpu.memory_space<vmem>>, vector<1x256xf32>
    %21 = vector.broadcast %20 : vector<1x256xf32> to vector<32x256xf32>
    %22 = arith.mulf %19, %21 : vector<32x256xf32>
    %c254_i32 = arith.constant 254 : i32
    %23 = tpu.dynamic_rotate %18 by %c254_i32 dim 1 : vector<32x256xf32>, i32 -> vector<32x256xf32>
    %c2_14 = arith.constant 2 : index
    %c0_15 = arith.constant 0 : index
    %24 = vector.load %arg9[%c2_14, %c0_15] : memref<3x256xf32, #tpu.memory_space<vmem>>, vector<1x256xf32>
    %25 = vector.broadcast %24 : vector<1x256xf32> to vector<32x256xf32>
    %26 = arith.mulf %23, %25 : vector<32x256xf32>
    %27 = tpu.concatenate %22, %18, %26 in 0 : vector<32x256xf32>, vector<32x256xf32>, vector<32x256xf32> -> vector<96x256xf32>
    %c0_16 = arith.constant 0 : index
    %c0_17 = arith.constant 0 : index
    %28 = vector.load %arg4[%c0_16, %c0_17] : memref<16x96xf32, #tpu.memory_space<vmem>>, vector<16x96xf32>
    %cst_18 = arith.constant dense<0.000000e+00> : vector<16x256xf32>
    %29 = tpu.matmul %28, %27, %cst_18 {dimension_numbers = #tpu.dot_dimension_numbers<[1], [0], [0], [1], [0, 0, 1, 1], [], []>} : vector<16x96xf32>, vector<96x256xf32>, vector<16x256xf32> -> vector<16x256xf32>
    %c0_19 = arith.constant 0 : index
    %c0_20 = arith.constant 0 : index
    %30 = vector.load %arg7[%c0_19, %c0_20] : memref<256x3xf32, #tpu.memory_space<vmem>>, vector<256x3xf32>
    %cst_21 = arith.constant dense<0.000000e+00> : vector<32x3xf32>
    %31 = tpu.matmul %18, %30, %cst_21 {dimension_numbers = #tpu.dot_dimension_numbers<[1], [0], [0], [1], [0, 0, 1, 1], [], []>} : vector<32x256xf32>, vector<256x3xf32>, vector<32x3xf32> -> vector<32x3xf32>
    %c0_22 = arith.constant 0 : index
    %c0_23 = arith.constant 0 : index
    %32 = vector.load %arg5[%c0_22, %c0_23] : memref<16x32xf32, #tpu.memory_space<vmem>>, vector<16x32xf32>
    %cst_24 = arith.constant dense<0.000000e+00> : vector<16x3xf32>
    %33 = tpu.matmul %32, %31, %cst_24 {dimension_numbers = #tpu.dot_dimension_numbers<[1], [0], [0], [1], [0, 0, 1, 1], [], []>} : vector<16x32xf32>, vector<32x3xf32>, vector<16x3xf32> -> vector<16x3xf32>
    %34 = vector.broadcast %5 : vector<16x1xf32> to vector<16x3xf32>
    %35 = arith.addf %33, %34 : vector<16x3xf32>
    %cst_25 = arith.constant 0.000000e+00 : f32
    %36 = vector.broadcast %cst_25 : f32 to vector<16x3xf32>
    %37 = arith.maximumf %35, %36 : vector<16x3xf32>
    %c0_26 = arith.constant 0 : index
    %c0_27 = arith.constant 0 : index
    %38 = vector.load %arg6[%c0_26, %c0_27] : memref<16x16xf32, #tpu.memory_space<vmem>>, vector<16x16xf32>
    %cst_28 = arith.constant dense<0.000000e+00> : vector<16x3xf32>
    %39 = tpu.matmul %38, %37, %cst_28 {dimension_numbers = #tpu.dot_dimension_numbers<[1], [0], [0], [1], [0, 0, 1, 1], [], []>} : vector<16x16xf32>, vector<16x3xf32>, vector<16x3xf32> -> vector<16x3xf32>
    %40 = vector.broadcast %6 : vector<16x1xf32> to vector<16x3xf32>
    %41 = arith.addf %39, %40 : vector<16x3xf32>
    %42 = arith.negf %41 : vector<16x3xf32>
    %43 = math.exp %42 : vector<16x3xf32>
    %cst_29 = arith.constant 1.000000e+00 : f32
    %44 = vector.broadcast %cst_29 : f32 to vector<16x3xf32>
    %45 = arith.addf %44, %43 : vector<16x3xf32>
    %46 = arith.divf %44, %45 : vector<16x3xf32>
    %c0_30 = arith.constant 0 : index
    %c0_31 = arith.constant 0 : index
    %47 = vector.load %arg8[%c0_30, %c0_31] : memref<3x256xf32, #tpu.memory_space<vmem>>, vector<3x256xf32>
    %cst_32 = arith.constant dense<0.000000e+00> : vector<16x256xf32>
    %48 = tpu.matmul %46, %47, %cst_32 {dimension_numbers = #tpu.dot_dimension_numbers<[1], [0], [0], [1], [0, 0, 1, 1], [], []>} : vector<16x3xf32>, vector<3x256xf32>, vector<16x256xf32> -> vector<16x256xf32>
    %49 = arith.mulf %29, %48 : vector<16x256xf32>
    %c0_33 = arith.constant 0 : index
    %c0_34 = arith.constant 0 : index
    %c0_35 = arith.constant 0 : index
    %50 = vector.load %arg10[%c0_33, %c0_34, %c0_35] : memref<1x16x256xf32, #tpu.memory_space<vmem>>, vector<1x16x256xf32>
    %51 = vector.shape_cast %50 : vector<1x16x256xf32> to vector<16x256xf32>
    %52 = vector.shape_cast %49 : vector<16x256xf32> to vector<1x16x256xf32>
    tpu.vector_store %arg10[%c0_33, %c0_34, %c0_35], %52 {strides = array<i32>} : memref<1x16x256xf32, #tpu.memory_space<vmem>>, vector<1x16x256xf32>,
    return
  }
  func.func @transform_0(%arg0: i32) -> (i32, i32, i32) {
    %c0_i32 = arith.constant 0 : i32
    %c0_i32_0 = arith.constant 0 : i32
    %c0_i32_1 = arith.constant 0 : i32
    return %arg0, %c0_i32, %c0_i32_0 : i32, i32, i32
  }
  func.func @transform_1(%arg0: i32) -> (i32, i32) {
    %c0_i32 = arith.constant 0 : i32
    %c0_i32_0 = arith.constant 0 : i32
    %c0_i32_1 = arith.constant 0 : i32
    return %c0_i32, %c0_i32_0 : i32, i32
  }
  func.func @transform_2(%arg0: i32) -> (i32, i32) {
    %c0_i32 = arith.constant 0 : i32
    %c0_i32_0 = arith.constant 0 : i32
    %c0_i32_1 = arith.constant 0 : i32
    return %c0_i32, %c0_i32_0 : i32, i32
  }
  func.func @transform_3(%arg0: i32) -> (i32, i32) {
    %c0_i32 = arith.constant 0 : i32
    %c0_i32_0 = arith.constant 0 : i32
    %c0_i32_1 = arith.constant 0 : i32
    return %c0_i32, %c0_i32_0 : i32, i32
  }
  func.func @transform_4(%arg0: i32) -> (i32, i32) {
    %c0_i32 = arith.constant 0 : i32
    %c0_i32_0 = arith.constant 0 : i32
    %c0_i32_1 = arith.constant 0 : i32
    return %c0_i32, %c0_i32_0 : i32, i32
  }
  func.func @transform_5(%arg0: i32) -> (i32, i32) {
    %c0_i32 = arith.constant 0 : i32
    %c0_i32_0 = arith.constant 0 : i32
    %c0_i32_1 = arith.constant 0 : i32
    return %c0_i32, %c0_i32_0 : i32, i32
  }
  func.func @transform_6(%arg0: i32) -> (i32, i32) {
    %c0_i32 = arith.constant 0 : i32
    %c0_i32_0 = arith.constant 0 : i32
    %c0_i32_1 = arith.constant 0 : i32
    return %c0_i32, %c0_i32_0 : i32, i32
  }
  func.func @transform_7(%arg0: i32) -> (i32, i32) {
    %c0_i32 = arith.constant 0 : i32
    %c0_i32_0 = arith.constant 0 : i32
    %c0_i32_1 = arith.constant 0 : i32
    return %c0_i32, %c0_i32_0 : i32, i32
  }
  func.func @transform_8(%arg0: i32) -> (i32, i32) {
    %c0_i32 = arith.constant 0 : i32
    %c0_i32_0 = arith.constant 0 : i32
    %c0_i32_1 = arith.constant 0 : i32
    return %c0_i32, %c0_i32_0 : i32, i32
  }
  func.func @transform_9(%arg0: i32) -> (i32, i32, i32) {
    %c0_i32 = arith.constant 0 : i32
    %c0_i32_0 = arith.constant 0 : i32
    %c0_i32_1 = arith.constant 0 : i32
    return %arg0, %c0_i32, %c0_i32_0 : i32, i32, i32
  }
}

module attributes {stable_mosaic.version = 11 : i64} {
  func.func @kernel(%arg0: i32, %arg1: memref<1x16x256xf32, #tpu.memory_space<vmem>>, %arg2: memref<32x5xf32, #tpu.memory_space<vmem>>, %arg3: memref<32x16xf32, #tpu.memory_space<vmem>>, %arg4: memref<16x96xf32, #tpu.memory_space<vmem>>, %arg5: memref<16x32xf32, #tpu.memory_space<vmem>>, %arg6: memref<16x16xf32, #tpu.memory_space<vmem>>, %arg7: memref<256x3xf32, #tpu.memory_space<vmem>>, %arg8: memref<3x256xf32, #tpu.memory_space<vmem>>, %arg9: memref<3x256xf32, #tpu.memory_space<vmem>>, %arg10: memref<1x16x256xf32, #tpu.memory_space<vmem>>) attributes {dimension_semantics = [#tpu.dimension_semantics<parallel>], iteration_bounds = array<i64: 2>, scalar_prefetch = 0 : i64, scratch_operands = 0 : i64, tpu.core_type = #tpu.core_type<tc>, window_params = [{transform_indices = @transform_0, window_bounds = array<i64: 1, 16, 256>}, {pipeline_mode = #tpu.pipeline_mode<synchronous>, transform_indices = @transform_1, window_bounds = array<i64: 32, 5>}, {pipeline_mode = #tpu.pipeline_mode<synchronous>, transform_indices = @transform_2, window_bounds = array<i64: 32, 16>}, {pipeline_mode = #tpu.pipeline_mode<synchronous>, transform_indices = @transform_3, window_bounds = array<i64: 16, 96>}, {pipeline_mode = #tpu.pipeline_mode<synchronous>, transform_indices = @transform_4, window_bounds = array<i64: 16, 32>}, {pipeline_mode = #tpu.pipeline_mode<synchronous>, transform_indices = @transform_5, window_bounds = array<i64: 16, 16>}, {pipeline_mode = #tpu.pipeline_mode<synchronous>, transform_indices = @transform_6, window_bounds = array<i64: 256, 3>}, {pipeline_mode = #tpu.pipeline_mode<synchronous>, transform_indices = @transform_7, window_bounds = array<i64: 3, 256>}, {pipeline_mode = #tpu.pipeline_mode<synchronous>, transform_indices = @transform_8, window_bounds = array<i64: 3, 256>}, {transform_indices = @transform_9, window_bounds = array<i64: 1, 16, 256>}]} {
    %c0 = arith.constant 0 : index
    %c0_0 = arith.constant 0 : index
    %c0_1 = arith.constant 0 : index
    %0 = vector.load %arg1[%c0, %c0_0, %c0_1] : memref<1x16x256xf32, #tpu.memory_space<vmem>>, vector<1x16x256xf32>
    %1 = vector.shape_cast %0 : vector<1x16x256xf32> to vector<16x256xf32>
    %c0_2 = arith.constant 0 : index
    %c0_3 = arith.constant 0 : index
    %2 = vector.load %arg2[%c0_2, %c0_3] : memref<32x5xf32, #tpu.memory_space<vmem>>, vector<16x1xf32>
    %c0_4 = arith.constant 0 : index
    %c1 = arith.constant 1 : index
    %3 = vector.load %arg2[%c0_4, %c1] : memref<32x5xf32, #tpu.memory_space<vmem>>, vector<16x1xf32>
    %c0_5 = arith.constant 0 : index
    %c2 = arith.constant 2 : index
    %4 = vector.load %arg2[%c0_5, %c2] : memref<32x5xf32, #tpu.memory_space<vmem>>, vector<32x1xf32>
    %c0_6 = arith.constant 0 : index
    %c3 = arith.constant 3 : index
    %5 = vector.load %arg2[%c0_6, %c3] : memref<32x5xf32, #tpu.memory_space<vmem>>, vector<16x1xf32>
    %c0_7 = arith.constant 0 : index
    %c4 = arith.constant 4 : index
    %6 = vector.load %arg2[%c0_7, %c4] : memref<32x5xf32, #tpu.memory_space<vmem>>, vector<16x1xf32>
    %7 = vector.broadcast %2 : vector<16x1xf32> to vector<16x256xf32>
    %8 = arith.mulf %1, %7 : vector<16x256xf32>
    %9 = vector.broadcast %3 : vector<16x1xf32> to vector<16x256xf32>
    %10 = arith.addf %8, %9 : vector<16x256xf32>
    %cst = arith.constant 0.000000e+00 : f32
    %11 = vector.broadcast %cst : f32 to vector<16x256xf32>
    %12 = arith.maximumf %10, %11 : vector<16x256xf32>
    %c0_8 = arith.constant 0 : index
    %c0_9 = arith.constant 0 : index
    %13 = vector.load %arg3[%c0_8, %c0_9] : memref<32x16xf32, #tpu.memory_space<vmem>>, vector<32x16xf32>
    %cst_10 = arith.constant dense<0.000000e+00> : vector<32x256xf32>
    %14 = tpu.matmul %13, %12, %cst_10 {dimension_numbers = #tpu.dot_dimension_numbers<[1], [0], [0], [1], [0, 0, 1, 1], [], []>} : vector<32x16xf32>, vector<16x256xf32>, vector<32x256xf32> -> vector<32x256xf32>
    %15 = vector.broadcast %4 : vector<32x1xf32> to vector<32x256xf32>
    %16 = arith.addf %14, %15 : vector<32x256xf32>
    %cst_11 = arith.constant 0.000000e+00 : f32
    %17 = vector.broadcast %cst_11 : f32 to vector<32x256xf32>
    %18 = arith.maximumf %16, %17 : vector<32x256xf32>
    %c2_i32 = arith.constant 2 : i32
    %19 = tpu.dynamic_rotate %18 by %c2_i32 dim 1 : vector<32x256xf32>, i32 -> vector<32x256xf32>
    %c0_12 = arith.constant 0 : index
    %c0_13 = arith.constant 0 : index
    %20 = vector.load %arg9[%c0_12, %c0_13] : memref<3x256xf32, #tpu.memory_space<vmem>>, vector<1x256xf32>
    %21 = vector.broadcast %20 : vector<1x256xf32> to vector<32x256xf32>
    %22 = arith.mulf %19, %21 : vector<32x256xf32>
    %c254_i32 = arith.constant 254 : i32
    %23 = tpu.dynamic_rotate %18 by %c254_i32 dim 1 : vector<32x256xf32>, i32 -> vector<32x256xf32>
    %c2_14 = arith.constant 2 : index
    %c0_15 = arith.constant 0 : index
    %24 = vector.load %arg9[%c2_14, %c0_15] : memref<3x256xf32, #tpu.memory_space<vmem>>, vector<1x256xf32>
    %25 = vector.broadcast %24 : vector<1x256xf32> to vector<32x256xf32>
    %26 = arith.mulf %23, %25 : vector<32x256xf32>
    %27 = tpu.concatenate %22, %18, %26 in 0 : vector<32x256xf32>, vector<32x256xf32>, vector<32x256xf32> -> vector<96x256xf32>
    %c0_16 = arith.constant 0 : index
    %c0_17 = arith.constant 0 : index
    %28 = vector.load %arg4[%c0_16, %c0_17] : memref<16x96xf32, #tpu.memory_space<vmem>>, vector<16x96xf32>
    %cst_18 = arith.constant dense<0.000000e+00> : vector<16x256xf32>
    %29 = tpu.matmul %28, %27, %cst_18 {dimension_numbers = #tpu.dot_dimension_numbers<[1], [0], [0], [1], [0, 0, 1, 1], [], []>} : vector<16x96xf32>, vector<96x256xf32>, vector<16x256xf32> -> vector<16x256xf32>
    %c0_19 = arith.constant 0 : index
    %c0_20 = arith.constant 0 : index
    %30 = vector.load %arg7[%c0_19, %c0_20] : memref<256x3xf32, #tpu.memory_space<vmem>>, vector<256x3xf32>
    %cst_21 = arith.constant dense<0.000000e+00> : vector<32x3xf32>
    %31 = tpu.matmul %18, %30, %cst_21 {dimension_numbers = #tpu.dot_dimension_numbers<[1], [0], [0], [1], [0, 0, 1, 1], [], []>} : vector<32x256xf32>, vector<256x3xf32>, vector<32x3xf32> -> vector<32x3xf32>
    %c0_22 = arith.constant 0 : index
    %c0_23 = arith.constant 0 : index
    %32 = vector.load %arg5[%c0_22, %c0_23] : memref<16x32xf32, #tpu.memory_space<vmem>>, vector<16x32xf32>
    %cst_24 = arith.constant dense<0.000000e+00> : vector<16x3xf32>
    %33 = tpu.matmul %32, %31, %cst_24 {dimension_numbers = #tpu.dot_dimension_numbers<[1], [0], [0], [1], [0, 0, 1, 1], [], []>} : vector<16x32xf32>, vector<32x3xf32>, vector<16x3xf32> -> vector<16x3xf32>
    %34 = vector.broadcast %5 : vector<16x1xf32> to vector<16x3xf32>
    %35 = arith.addf %33, %34 : vector<16x3xf32>
    %cst_25 = arith.constant 0.000000e+00 : f32
    %36 = vector.broadcast %cst_25 : f32 to vector<16x3xf32>
    %37 = arith.maximumf %35, %36 : vector<16x3xf32>
    %c0_26 = arith.constant 0 : index
    %c0_27 = arith.constant 0 : index
    %38 = vector.load %arg6[%c0_26, %c0_27] : memref<16x16xf32, #tpu.memory_space<vmem>>, vector<16x16xf32>
    %cst_28 = arith.constant dense<0.000000e+00> : vector<16x3xf32>
    %39 = tpu.matmul %38, %37, %cst_28 {dimension_numbers = #tpu.dot_dimension_numbers<[1], [0], [0], [1], [0, 0, 1, 1], [], []>} : vector<16x16xf32>, vector<16x3xf32>, vector<16x3xf32> -> vector<16x3xf32>
    %40 = vector.broadcast %6 : vector<16x1xf32> to vector<16x3xf32>
    %41 = arith.addf %39, %40 : vector<16x3xf32>
    %42 = arith.negf %41 : vector<16x3xf32>
    %43 = math.exp %42 : vector<16x3xf32>
    %cst_29 = arith.constant 1.000000e+00 : f32
    %44 = vector.broadcast %cst_29 : f32 to vector<16x3xf32>
    %45 = arith.addf %44, %43 : vector<16x3xf32>
    %46 = arith.divf %44, %45 : vector<16x3xf32>
    %c0_30 = arith.constant 0 : index
    %c0_31 = arith.constant 0 : index
    %47 = vector.load %arg8[%c0_30, %c0_31] : memref<3x256xf32, #tpu.memory_space<vmem>>, vector<3x256xf32>
    %cst_32 = arith.constant dense<0.000000e+00> : vector<16x256xf32>
    %48 = tpu.matmul %46, %47, %cst_32 {dimension_numbers = #tpu.dot_dimension_numbers<[1], [0], [0], [1], [0, 0, 1, 1], [], []>} : vector<16x3xf32>, vector<3x256xf32>, vector<16x256xf32> -> vector<16x256xf32>
    %49 = arith.mulf %29, %48 : vector<16x256xf32>
    %c0_33 = arith.constant 0 : index
    %c0_34 = arith.constant 0 : index
    %c0_35 = arith.constant 0 : index
    %50 = vector.load %arg10[%c0_33, %c0_34, %c0_35] : memref<1x16x256xf32, #tpu.memory_space<vmem>>, vector<1x16x256xf32>
    %51 = vector.shape_cast %50 : vector<1x16x256xf32> to vector<16x256xf32>
    %52 = vector.shape_cast %49 : vector<16x256xf32> to vector<1x16x256xf32>
    tpu.vector_store %arg10[%c0_33, %c0_34, %c0_35], %52 {strides = array<i32>} : memref<1x16x256xf32, #tpu.memory_space<vmem>>, vector<1x16x256xf32>,
    return
  }
  func.func @transform_0(%arg0: i32) -> (i32, i32, i32) {
    %c0_i32 = arith.constant 0 : i32
    %c0_i32_0 = arith.constant 0 : i32
    %c0_i32_1 = arith.constant 0 : i32
    return %arg0, %c0_i32, %c0_i32_0 : i32, i32, i32
  }
  func.func @transform_1(%arg0: i32) -> (i32, i32) {
    %c0_i32 = arith.constant 0 : i32
    %c0_i32_0 = arith.constant 0 : i32
    %c0_i32_1 = arith.constant 0 : i32
    return %c0_i32, %c0_i32_0 : i32, i32
  }
  func.func @transform_2(%arg0: i32) -> (i32, i32) {
    %c0_i32 = arith.constant 0 : i32
    %c0_i32_0 = arith.constant 0 : i32
    %c0_i32_1 = arith.constant 0 : i32
    return %c0_i32, %c0_i32_0 : i32, i32
  }
  func.func @transform_3(%arg0: i32) -> (i32, i32) {
    %c0_i32 = arith.constant 0 : i32
    %c0_i32_0 = arith.constant 0 : i32
    %c0_i32_1 = arith.constant 0 : i32
    return %c0_i32, %c0_i32_0 : i32, i32
  }
  func.func @transform_4(%arg0: i32) -> (i32, i32) {
    %c0_i32 = arith.constant 0 : i32
    %c0_i32_0 = arith.constant 0 : i32
    %c0_i32_1 = arith.constant 0 : i32
    return %c0_i32, %c0_i32_0 : i32, i32
  }
  func.func @transform_5(%arg0: i32) -> (i32, i32) {
    %c0_i32 = arith.constant 0 : i32
    %c0_i32_0 = arith.constant 0 : i32
    %c0_i32_1 = arith.constant 0 : i32
    return %c0_i32, %c0_i32_0 : i32, i32
  }
  func.func @transform_6(%arg0: i32) -> (i32, i32) {
    %c0_i32 = arith.constant 0 : i32
    %c0_i32_0 = arith.constant 0 : i32
    %c0_i32_1 = arith.constant 0 : i32
    return %c0_i32, %c0_i32_0 : i32, i32
  }
  func.func @transform_7(%arg0: i32) -> (i32, i32) {
    %c0_i32 = arith.constant 0 : i32
    %c0_i32_0 = arith.constant 0 : i32
    %c0_i32_1 = arith.constant 0 : i32
    return %c0_i32, %c0_i32_0 : i32, i32
  }
  func.func @transform_8(%arg0: i32) -> (i32, i32) {
    %c0_i32 = arith.constant 0 : i32
    %c0_i32_0 = arith.constant 0 : i32
    %c0_i32_1 = arith.constant 0 : i32
    return %c0_i32, %c0_i32_0 : i32, i32
  }
  func.func @transform_9(%arg0: i32) -> (i32, i32, i32) {
    %c0_i32 = arith.constant 0 : i32
    %c0_i32_0 = arith.constant 0 : i32
    %c0_i32_1 = arith.constant 0 : i32
    return %arg0, %c0_i32, %c0_i32_0 : i32, i32, i32
  }
}

</mosaic_0001>

<llo_original>
// kernel: tpu_custom_call.1
$region0: #{tpu_custom_call.1}
  #allocation0 [shape = 'u32[]', space=smem, size = 0x4, offset = 0x4, fixed_abs, tag = 'smem constant byte address 0x4 - core index']
  #allocation1 [shape = 'u32[144,128]{1,0:T(1,128)}', space=vmem, size = 0x12000, scoped, tag = 'internal scratch']
  %s0 = inlined_call_operand.vmem [shape: f32[2,16,256], index: 0, kind: input, shape index: {}]
  %s1 = inlined_call_operand.vmem [shape: f32[32,5], index: 1, kind: input, shape index: {}]
  %s2 = inlined_call_operand.vmem [shape: f32[32,16], index: 2, kind: input, shape index: {}]
  %s3 = inlined_call_operand.vmem [shape: f32[16,96], index: 3, kind: input, shape index: {}]
  %s4 = inlined_call_operand.vmem [shape: f32[16,32], index: 4, kind: input, shape index: {}]
  %s5 = inlined_call_operand.vmem [shape: f32[16,16], index: 5, kind: input, shape index: {}]
  %s6 = inlined_call_operand.vmem [shape: f32[256,3], index: 6, kind: input, shape index: {}]
  %s7 = inlined_call_operand.vmem [shape: f32[3,256], index: 7, kind: input, shape index: {}]
  %s8 = inlined_call_operand.vmem [shape: f32[3,256], index: 8, kind: input, shape index: {}]
  %s9 = inlined_call_operand.hbm [shape: f32[2,16,256], index: 9, kind: output, shape index: {}]
  %s10 = sld [smem:[#allocation0]]
  $region69: #{tpu_custom_call.1} parent=0
    _
  %s12 = ssub.s32 1, %s10
  %s13 = scalar_select 0, %s12, %s10
  $region1: #{tpu_custom_call.1} parent=0
    #allocation2 [shape = 'u8[32768]{0}', space=vmem, size = 0x8000, scoped, tag = 'output window, operand 0']
    #allocation3 [shape = 's32[2]{0}', space=sflag, size = 0x8, scoped, tag = 'scoped memory for tpu_custom_call.1']
    %14 = vsyncpa [#allocation3], 0
    %s15 = scalar_lea.sflag [#allocation3], 1
    %16 = vsyncpa %s15, 0
    loop: start=0, step=1, limit=4
    $region2: #{tpu_custom_call.1} parent=1 // loop_pre_header
      _
    $region3: #{tpu_custom_call.1} parent=1 // loop_header
      %s18 = sphi 0, %s22
      %p19 = scmp.ge.s32.totalorder %s18, 4
      %s28 = sphi 0, %s30
      %s31 = sphi 0, %s28
      %s32 = sphi 0, %s31
      %s48 = sphi 0, %s32
      %s52 = sphi 0, %s52
      %s54 = sphi 0, %s52
      %s55 = sphi 0, %s54
      %s69 = sphi 0, %s55
      %s73 = sphi 0, %s73
      %s75 = sphi 0, %s73
      %s76 = sphi 0, %s75
      %s90 = sphi 0, %s76
      %s94 = sphi 0, %s94
      %s96 = sphi 0, %s94
      %s97 = sphi 0, %s96
      %s111 = sphi 0, %s97
      %s115 = sphi 0, %s115
      %s117 = sphi 0, %s115
      %s118 = sphi 0, %s117
      %s132 = sphi 0, %s118
      %s136 = sphi 0, %s136
      %s138 = sphi 0, %s136
      %s139 = sphi 0, %s138
      %s153 = sphi 0, %s139
      %s157 = sphi 0, %s157
      %s159 = sphi 0, %s157
      %s160 = sphi 0, %s159
      %s174 = sphi 0, %s160
      %s178 = sphi 0, %s178
      %s180 = sphi 0, %s178
      %s181 = sphi 0, %s180
      %s195 = sphi 0, %s181
      %s199 = sphi 0, %s199
      %s201 = sphi 0, %s199
      %s202 = sphi 0, %s201
      %s216 = sphi 0, %s202
      %s222 = sphi 0, %s224
      %s225 = sphi 0, %s222
      %s226 = sphi 0, %s225
      %s242 = sphi 0, %s226
    $region4: #{tpu_custom_call.1} parent=1 // loop_header_branch
      %21 = sbr.rel (%p19) target = $region8
    $region5: #{tpu_custom_call.1} parent=1 // loop_body
      %s23 = ssub.s32 %s18, 1
      %s24 = ssub.s32 %s18, 2
      %s25 = sadd.s32 %s18, 1
      %s26 = ssub.s32 %s18, %s25
      %p27 = scmp.eq.s32.totalorder %s26, 0
      %s29 = sadd.s32 %s28, 1
      %s30 = scalar_select %p27, %s28, %s29
      %p33 = pneg %p27
      %p34 = scmp.eq.s32.totalorder %s18, 1
      %p35 = por %p33, %p34
      %p36 = scmp.ne.s32.totalorder %s28, %s31
      %p37 = scmp.eq.s32.totalorder %s18, 0
      %p38 = por %p36, %p37
      %p39 = scmp.ne.s32.totalorder %s28, %s31
      %p40 = scmp.eq.s32.totalorder %s23, 1
      %p41 = por %p39, %p40
      %p42 = scmp.ne.s32.totalorder %s31, %s32
      %p43 = scmp.eq.s32.totalorder %s23, 0
      %p44 = por %p42, %p43
      %p45 = scmp.ne.s32.totalorder %s31, %s32
      %p46 = scmp.eq.s32.totalorder %s24, 1
      %p47 = por %p45, %p46
      %p49 = scmp.ne.s32.totalorder %s32, %s48
      %p50 = scmp.eq.s32.totalorder %s24, 0
      %p51 = por %p49, %p50
      %s53 = sadd.s32 %s52, 1
      %p56 = scmp.eq.s32.totalorder %s18, 1
      %p57 = scmp.ne.s32.totalorder %s52, %s54
      %p58 = scmp.eq.s32.totalorder %s18, 0
      %p59 = por %p57, %p58
      %p60 = scmp.ne.s32.totalorder %s52, %s54
      %p61 = scmp.eq.s32.totalorder %s23, 1
      %p62 = por %p60, %p61
      %p63 = scmp.ne.s32.totalorder %s54, %s55
      %p64 = scmp.eq.s32.totalorder %s23, 0
      %p65 = por %p63, %p64
      %p66 = scmp.ne.s32.totalorder %s54, %s55
      %p67 = scmp.eq.s32.totalorder %s24, 1
      %p68 = por %p66, %p67
      %p70 = scmp.ne.s32.totalorder %s55, %s69
      %p71 = scmp.eq.s32.totalorder %s24, 0
      %p72 = por %p70, %p71
      %s74 = sadd.s32 %s73, 1
      %p77 = scmp.eq.s32.totalorder %s18, 1
      %p78 = scmp.ne.s32.totalorder %s73, %s75
      %p79 = scmp.eq.s32.totalorder %s18, 0
      %p80 = por %p78, %p79
      %p81 = scmp.ne.s32.totalorder %s73, %s75
      %p82 = scmp.eq.s32.totalorder %s23, 1
      %p83 = por %p81, %p82
      %p84 = scmp.ne.s32.totalorder %s75, %s76
      %p85 = scmp.eq.s32.totalorder %s23, 0
      %p86 = por %p84, %p85
      %p87 = scmp.ne.s32.totalorder %s75, %s76
      %p88 = scmp.eq.s32.totalorder %s24, 1
      %p89 = por %p87, %p88
      %p91 = scmp.ne.s32.totalorder %s76, %s90
      %p92 = scmp.eq.s32.totalorder %s24, 0
      %p93 = por %p91, %p92
      %s95 = sadd.s32 %s94, 1
      %p98 = scmp.eq.s32.totalorder %s18, 1
      %p99 = scmp.ne.s32.totalorder %s94, %s96
      %p100 = scmp.eq.s32.totalorder %s18, 0
      %p101 = por %p99, %p100
      %p102 = scmp.ne.s32.totalorder %s94, %s96
      %p103 = scmp.eq.s32.totalorder %s23, 1
      %p104 = por %p102, %p103
      %p105 = scmp.ne.s32.totalorder %s96, %s97
      %p106 = scmp.eq.s32.totalorder %s23, 0
      %p107 = por %p105, %p106
      %p108 = scmp.ne.s32.totalorder %s96, %s97
      %p109 = scmp.eq.s32.totalorder %s24, 1
      %p110 = por %p108, %p109
      %p112 = scmp.ne.s32.totalorder %s97, %s111
      %p113 = scmp.eq.s32.totalorder %s24, 0
      %p114 = por %p112, %p113
      %s116 = sadd.s32 %s115, 1
      %p119 = scmp.eq.s32.totalorder %s18, 1
      %p120 = scmp.ne.s32.totalorder %s115, %s117
      %p121 = scmp.eq.s32.totalorder %s18, 0
      %p122 = por %p120, %p121
      %p123 = scmp.ne.s32.totalorder %s115, %s117
      %p124 = scmp.eq.s32.totalorder %s23, 1
      %p125 = por %p123, %p124
      %p126 = scmp.ne.s32.totalorder %s117, %s118
      %p127 = scmp.eq.s32.totalorder %s23, 0
      %p128 = por %p126, %p127
      %p129 = scmp.ne.s32.totalorder %s117, %s118
      %p130 = scmp.eq.s32.totalorder %s24, 1
      %p131 = por %p129, %p130
      %p133 = scmp.ne.s32.totalorder %s118, %s132
      %p134 = scmp.eq.s32.totalorder %s24, 0
      %p135 = por %p133, %p134
      %s137 = sadd.s32 %s136, 1
      %p140 = scmp.eq.s32.totalorder %s18, 1
      %p141 = scmp.ne.s32.totalorder %s136, %s138
      %p142 = scmp.eq.s32.totalorder %s18, 0
      %p143 = por %p141, %p142
      %p144 = scmp.ne.s32.totalorder %s136, %s138
      %p145 = scmp.eq.s32.totalorder %s23, 1
      %p146 = por %p144, %p145
      %p147 = scmp.ne.s32.totalorder %s138, %s139
      %p148 = scmp.eq.s32.totalorder %s23, 0
      %p149 = por %p147, %p148
      %p150 = scmp.ne.s32.totalorder %s138, %s139
      %p151 = scmp.eq.s32.totalorder %s24, 1
      %p152 = por %p150, %p151
      %p154 = scmp.ne.s32.totalorder %s139, %s153
      %p155 = scmp.eq.s32.totalorder %s24, 0
      %p156 = por %p154, %p155
      %s158 = sadd.s32 %s157, 1
      %p161 = scmp.eq.s32.totalorder %s18, 1
      %p162 = scmp.ne.s32.totalorder %s157, %s159
      %p163 = scmp.eq.s32.totalorder %s18, 0
      %p164 = por %p162, %p163
      %p165 = scmp.ne.s32.totalorder %s157, %s159
      %p166 = scmp.eq.s32.totalorder %s23, 1
      %p167 = por %p165, %p166
      %p168 = scmp.ne.s32.totalorder %s159, %s160
      %p169 = scmp.eq.s32.totalorder %s23, 0
      %p170 = por %p168, %p169
      %p171 = scmp.ne.s32.totalorder %s159, %s160
      %p172 = scmp.eq.s32.totalorder %s24, 1
      %p173 = por %p171, %p172
      %p175 = scmp.ne.s32.totalorder %s160, %s174
      %p176 = scmp.eq.s32.totalorder %s24, 0
      %p177 = por %p175, %p176
      %s179 = sadd.s32 %s178, 1
      %p182 = scmp.eq.s32.totalorder %s18, 1
      %p183 = scmp.ne.s32.totalorder %s178, %s180
      %p184 = scmp.eq.s32.totalorder %s18, 0
      %p185 = por %p183, %p184
      %p186 = scmp.ne.s32.totalorder %s178, %s180
      %p187 = scmp.eq.s32.totalorder %s23, 1
      %p188 = por %p186, %p187
      %p189 = scmp.ne.s32.totalorder %s180, %s181
      %p190 = scmp.eq.s32.totalorder %s23, 0
      %p191 = por %p189, %p190
      %p192 = scmp.ne.s32.totalorder %s180, %s181
      %p193 = scmp.eq.s32.totalorder %s24, 1
      %p194 = por %p192, %p193
      %p196 = scmp.ne.s32.totalorder %s181, %s195
      %p197 = scmp.eq.s32.totalorder %s24, 0
      %p198 = por %p196, %p197
      %s200 = sadd.s32 %s199, 1
      %p203 = scmp.eq.s32.totalorder %s18, 1
      %p204 = scmp.ne.s32.totalorder %s199, %s201
      %p205 = scmp.eq.s32.totalorder %s18, 0
      %p206 = por %p204, %p205
      %p207 = scmp.ne.s32.totalorder %s199, %s201
      %p208 = scmp.eq.s32.totalorder %s23, 1
      %p209 = por %p207, %p208
      %p210 = scmp.ne.s32.totalorder %s201, %s202
      %p211 = scmp.eq.s32.totalorder %s23, 0
      %p212 = por %p210, %p211
      %p213 = scmp.ne.s32.totalorder %s201, %s202
      %p214 = scmp.eq.s32.totalorder %s24, 1
      %p215 = por %p213, %p214
      %p217 = scmp.ne.s32.totalorder %s202, %s216
      %p218 = scmp.eq.s32.totalorder %s24, 0
      %p219 = por %p217, %p218
      %s220 = ssub.s32 %s18, %s25
      %p221 = scmp.eq.s32.totalorder %s220, 0
      %s223 = sadd.s32 %s222, 1
      %s224 = scalar_select %p221, %s222, %s223
      %p227 = pneg %p221
      %p228 = scmp.eq.s32.totalorder %s18, 1
      %p229 = por %p227, %p228
      %p230 = scmp.ne.s32.totalorder %s222, %s225
      %p231 = scmp.eq.s32.totalorder %s18, 0
      %p232 = por %p230, %p231
      %p233 = scmp.ne.s32.totalorder %s222, %s225
      %p234 = scmp.eq.s32.totalorder %s23, 1
      %p235 = por %p233, %p234
      %p236 = scmp.ne.s32.totalorder %s225, %s226
      %p237 = scmp.eq.s32.totalorder %s23, 0
      %p238 = por %p236, %p237
      %p239 = scmp.ne.s32.totalorder %s225, %s226
      %p240 = scmp.eq.s32.totalorder %s24, 1
      %p241 = por %p239, %p240
      %p243 = scmp.ne.s32.totalorder %s226, %s242
      %p244 = scmp.eq.s32.totalorder %s24, 0
      %p245 = por %p243, %p244
      %p246 = scmp.le.s32.totalorder 1, %s18
      %p247 = scmp.lt.s32.totalorder %s18, 3
      %p248 = pnand %p246, %p247
      %p249 = pneg %p248
      // Predicated region
      $region9: #{tpu_custom_call.1} parent=5 // pred_check
        _
      $region10: #{tpu_custom_call.1} parent=5 // pred_check_branch
        %251 = sbr.rel (%p248) target = $region12
      $region11: #{tpu_custom_call.1} parent=5 // pred_region
        %s252 = ssub.s32 %s18, 1
        // Predicated region
        $region13: #{tpu_custom_call.1} parent=11 // pred_check
          %p253 = pneg %p65
        $region14: #{tpu_custom_call.1} parent=11 // pred_check_branch
          %255 = sbr.rel (%p253) target = $region16
        $region15: #{tpu_custom_call.1} parent=11 // pred_region
          _
        $region16: #{tpu_custom_call.1} parent=11 // pred_fallthru
          _
        // Predicated region
        $region17: #{tpu_custom_call.1} parent=11 // pred_check
          %p256 = pneg %p86
        $region18: #{tpu_custom_call.1} parent=11 // pred_check_branch
          %258 = sbr.rel (%p256) target = $region20
        $region19: #{tpu_custom_call.1} parent=11 // pred_region
          _
        $region20: #{tpu_custom_call.1} parent=11 // pred_fallthru
          _
        // Predicated region
        $region21: #{tpu_custom_call.1} parent=11 // pred_check
          %p259 = pneg %p107
        $region22: #{tpu_custom_call.1} parent=11 // pred_check_branch
          %261 = sbr.rel (%p259) target = $region24
        $region23: #{tpu_custom_call.1} parent=11 // pred_region
          _
        $region24: #{tpu_custom_call.1} parent=11 // pred_fallthru
          _
        // Predicated region
        $region25: #{tpu_custom_call.1} parent=11 // pred_check
          %p262 = pneg %p128
        $region26: #{tpu_custom_call.1} parent=11 // pred_check_branch
          %264 = sbr.rel (%p262) target = $region28
        $region27: #{tpu_custom_call.1} parent=11 // pred_region
          _
        $region28: #{tpu_custom_call.1} parent=11 // pred_fallthru
          _
        // Predicated region
        $region29: #{tpu_custom_call.1} parent=11 // pred_check
          %p265 = pneg %p149
        $region30: #{tpu_custom_call.1} parent=11 // pred_check_branch
          %267 = sbr.rel (%p265) target = $region32
        $region31: #{tpu_custom_call.1} parent=11 // pred_region
          _
        $region32: #{tpu_custom_call.1} parent=11 // pred_fallthru
          _
        // Predicated region
        $region33: #{tpu_custom_call.1} parent=11 // pred_check
          %p268 = pneg %p170
        $region34: #{tpu_custom_call.1} parent=11 // pred_check_branch
          %270 = sbr.rel (%p268) target = $region36
        $region35: #{tpu_custom_call.1} parent=11 // pred_region
          _
        $region36: #{tpu_custom_call.1} parent=11 // pred_fallthru
          _
        // Predicated region
        $region37: #{tpu_custom_call.1} parent=11 // pred_check
          %p271 = pneg %p191
        $region38: #{tpu_custom_call.1} parent=11 // pred_check_branch
          %273 = sbr.rel (%p271) target = $region40
        $region39: #{tpu_custom_call.1} parent=11 // pred_region
          _
        $region40: #{tpu_custom_call.1} parent=11 // pred_fallthru
          _
        // Predicated region
        $region41: #{tpu_custom_call.1} parent=11 // pred_check
          %p274 = pneg %p212
        $region42: #{tpu_custom_call.1} parent=11 // pred_check_branch
          %276 = sbr.rel (%p274) target = $region44
        $region43: #{tpu_custom_call.1} parent=11 // pred_region
          _
        $region44: #{tpu_custom_call.1} parent=11 // pred_fallthru
          _
      $region12: #{tpu_custom_call.1} parent=5 // pred_fallthru
        _
      %p277 = scmp.lt.s32.totalorder %s18, 2
      // Predicated region
      $region45: #{tpu_custom_call.1} parent=5 // pred_check
        %p278 = pneg %p277
      $region46: #{tpu_custom_call.1} parent=5 // pred_check_branch
        %280 = sbr.rel (%p278) target = $region48
      $region47: #{tpu_custom_call.1} parent=5 // pred_region
        // Predicated region
        $region49: #{tpu_custom_call.1} parent=47 // pred_check
          %p281 = pneg %p38
        $region50: #{tpu_custom_call.1} parent=47 // pred_check_branch
          %283 = sbr.rel (%p281) target = $region52
        $region51: #{tpu_custom_call.1} parent=47 // pred_region
          %p284 = scmp.lt.s32.totalorder %s18, 1
          %s285 = scalar_select %p284, %s18, 1
          %s286 = smul.addr %s285, 4
          %s287 = smul.addr %s286, 8
          %s288 = scalar_lea.vmem %s0, %s287
        $region52: #{tpu_custom_call.1} parent=47 // pred_fallthru
          _
      $region48: #{tpu_custom_call.1} parent=5 // pred_fallthru
        _
      %p289 = scmp.le.s32.totalorder 1, %s18
      %p290 = scmp.lt.s32.totalorder %s18, 3
      %p291 = pnand %p289, %p290
      %p292 = pneg %p291
      // Predicated region
      $region53: #{tpu_custom_call.1} parent=5 // pred_check
        _
      $region54: #{tpu_custom_call.1} parent=5 // pred_check_branch
        %294 = sbr.rel (%p291) target = $region56
      $region55: #{tpu_custom_call.1} parent=5 // pred_region
        %s295 = ssub.s32 %s18, 1
        %p296 = scmp.lt.s32.totalorder %s23, 1
        %s297 = scalar_select %p296, %s23, 1
        %s298 = smul.addr %s297, 4
        %s299 = smul.addr %s298, 8
        %s300 = scalar_lea.vmem %s0, %s299
        %p301 = pneg %p44
        %p302 = pneg %p41
        %p303 = pneg %p65
        %p304 = pneg %p62
        %p305 = pneg %p86
        %p306 = pneg %p83
        %p307 = pneg %p107
        %p308 = pneg %p104
        %p309 = pneg %p128
        %p310 = pneg %p125
        %p311 = pneg %p149
        %p312 = pneg %p146
        %p313 = pneg %p170
        %p314 = pneg %p167
        %p315 = pneg %p191
        %p316 = pneg %p188
        %p317 = pneg %p212
        %p318 = pneg %p209
        %p319 = pneg %p238
        %p320 = pneg %p235
        %s321 = sand.u32 %s225, 1
        %s322 = scalar_lea.sflag [#allocation3], %s321
        %s323 = sand.u32 %s225, 1
        %s324 = smul.addr %s323, 32
        %s325 = scalar_lea.vmem [#allocation2], %s324
        %p326 = scmp.lt.s32.totalorder %s23, 1
        %s327 = scalar_select %p326, %s23, 1
        %s328 = smul.addr %s327, 4
        %s329 = smul.addr %s328, 8
        %s330 = scalar_lea.vmem %s0, %s329
        %v331 = vld [vmem:[%s330] sm:$0xff]
        %v332 = vld [vmem:[%s330 + $0x8] sm:$0xff]
        %v333 = vld [vmem:[%s330 + $0x10] sm:$0xff]
        %v334 = vld [vmem:[%s330 + $0x18] sm:$0xff]
        %v335 = vld [vmem:[%s1] sm:$0xff]
        %v336 = vld [vmem:[%s1 + $0x8] sm:$0xff]
        %v337 = vld [vmem:[%s1 + $0x10] sm:$0xff]
        %v338 = vld [vmem:[%s1 + $0x18] sm:$0xff]
        %340 = vset.pattern.permute.xlu0 0
        %341 = vperm.xlu0 %340, %v335
        %v342 = vpop.permute.xlu0 %341
        %345 = vset.pattern.permute.xlu0 0
        %346 = vperm.xlu0 %345, %v336
        %v347 = vpop.permute.xlu0 %346
        %v349 = vmul.f32 %v331, %v342
        %v350 = vmul.f32 %v332, %v342
        %v351 = vmul.f32 %v333, %v347
        %v352 = vmul.f32 %v334, %v347
        %353 = vset.pattern.permute.xlu0 1
        %354 = vperm.xlu0 %353, %v335
        %v355 = vpop.permute.xlu0 %354
        %357 = vset.pattern.permute.xlu0 1
        %358 = vperm.xlu0 %357, %v336
        %v359 = vpop.permute.xlu0 %358
        %v361 = vadd.f32 %v349, %v355
        %v362 = vadd.f32 %v350, %v355
        %v363 = vadd.f32 %v351, %v359
        %v364 = vadd.f32 %v352, %v359
        %v365 = vmax.f32 %v361, 0.0
        %v366 = vmax.f32 %v362, 0.0
        %v367 = vmax.f32 %v363, 0.0
        %v368 = vmax.f32 %v364, 0.0
        %v369 = vld [vmem:[%s2] sm:$0xff]
        %v370 = vld [vmem:[%s2 + $0x8] sm:$0xff]
        %v371 = vld [vmem:[%s2 + $0x10] sm:$0xff]
        %v372 = vld [vmem:[%s2 + $0x18] sm:$0xff]
        %373 = vset.pattern.permute.xlu0 2
        %374 = vperm.xlu0 %373, %v335
        %v375 = vpop.permute.xlu0 %374
        %377 = vset.pattern.permute.xlu0 2
        %378 = vperm.xlu0 %377, %v336
        %v379 = vpop.permute.xlu0 %378
        %382 = vset.pattern.permute.xlu0 2
        %383 = vperm.xlu0 %382, %v337
        %v384 = vpop.permute.xlu0 %383
        %387 = vset.pattern.permute.xlu0 2
        %388 = vperm.xlu0 %387, %v338
        %v389 = vpop.permute.xlu0 %388
        %vm391 = vcmask 130048
        %v393 = vsel %vm391, %v369, 0
        %v396 = vsel %vm391, %v370, 0
        %v399 = vsel %vm391, %v371, 0
        %v402 = vsel %vm391, %v372, 0
        %404 = vmatprep.subr.mxu0 %v366
        %405 = vmatpush1.msra.mxu0 %v365
        %406 = vmatprep.subr.mxu0 %v368
        %407 = vmatpush1.msra.mxu0 %v367
        %408 = vmatprep.subr.mxu0 0.0
        %409 = vmatpush1.msra.mxu0 0.0
        %410 = vmatprep.subr.mxu0 0.0
        %411 = vmatpush1.msra.mxu0 0.0
        %412 = vmatprep.subr.mxu0 0.0
        %413 = vmatpush1.msra.mxu0 0.0
        %414 = vmatprep.subr.mxu0 0.0
        %415 = vmatpush1.msra.mxu0 0.0
        %416 = vmatprep.subr.mxu0 0.0
        %417 = vmatpush1.msra.mxu0 0.0
        %418 = vmatprep.subr.mxu0 0.0
        %419 = vmatpush1.msra.mxu0 0.0
        %420 = vmatprep.subr.mxu0 0.0
        %421 = vmatpush1.msra.mxu0 0.0
        %422 = vmatprep.subr.mxu0 0.0
        %423 = vmatpush1.msra.mxu0 0.0
        %424 = vmatprep.subr.mxu0 0.0
        %425 = vmatpush1.msra.mxu0 0.0
        %426 = vmatprep.subr.mxu0 0.0
        %427 = vmatpush1.msra.mxu0 0.0
        %428 = vmatprep.subr.mxu0 0.0
        %429 = vmatpush1.msra.mxu0 0.0
        %430 = vmatprep.subr.mxu0 0.0
        %431 = vmatpush1.msra.mxu0 0.0
        %432 = vmatprep.subr.mxu0 0.0
        %433 = vmatpush1.msra.mxu0 0.0
        %434 = vmatprep.subr.mxu0 0.0
        %435 = vmatpush1.msra.mxu0 0.0
        %436 = vmatprep.subr.mxu0 0.0
        %437 = vmatpush1.msra.mxu0 0.0
        %438 = vmatprep.subr.mxu0 0.0
        %439 = vmatpush1.msra.mxu0 0.0
        %440 = vmatprep.subr.mxu0 0.0
        %441 = vmatpush1.msra.mxu0 0.0
        %442 = vmatprep.subr.mxu0 0.0
        %443 = vmatpush1.msra.mxu0 0.0
        %444 = vmatprep.subr.mxu0 0.0
        %445 = vmatpush1.msra.mxu0 0.0
        %446 = vmatprep.subr.mxu0 0.0
        %447 = vmatpush1.msra.mxu0 0.0
        %448 = vmatprep.subr.mxu0 0.0
        %449 = vmatpush1.msra.mxu0 0.0
        %450 = vmatprep.subr.mxu0 0.0
        %451 = vmatpush1.msra.mxu0 0.0
        %452 = vmatprep.subr.mxu0 0.0
        %453 = vmatpush1.msra.mxu0 0.0
        %454 = vmatprep.subr.mxu0 0.0
        %455 = vmatpush1.msra.mxu0 0.0
        %456 = vmatprep.subr.mxu0 0.0
        %457 = vmatpush1.msra.mxu0 0.0
        %458 = vmatprep.subr.mxu0 0.0
        %459 = vmatpush1.msra.mxu0 0.0
        %460 = vmatprep.subr.mxu0 0.0
        %461 = vmatpush1.msra.mxu0 0.0
        %462 = vmatprep.subr.mxu0 0.0
        %463 = vmatpush1.msra.mxu0 0.0
        %464 = vmatprep.subr.mxu0 0.0
        %465 = vmatpush1.msra.mxu0 0.0
        %466 = vmatprep.subr.mxu0 0.0
        %467 = vmatpush1.msra.mxu0 0.0
        %468 = vmatprep.mubr.f32.mxu0 0.0
        %469 = vmatmul.mubr.f32.gmra.mrb[0].mxu0 %v393
        %v470 = vpop.f32.mrb[0].mxu0
        %v471 = vadd.f32 %v375, %v470
        %v472 = vpop.f32.mrb[0].mxu0
        %v473 = vadd.f32 %v375, %v472
        %474 = vmatprep.mubr.f32.mxu0 0.0
        %475 = vmatmul.mubr.f32.gmra.mrb[0].mxu0 %v396
        %v476 = vpop.f32.mrb[0].mxu0
        %v477 = vadd.f32 %v379, %v476
        %v478 = vpop.f32.mrb[0].mxu0
        %v479 = vadd.f32 %v379, %v478
        %480 = vmatprep.mubr.f32.mxu0 0.0
        %481 = vmatmul.mubr.f32.gmra.mrb[0].mxu0 %v399
        %v482 = vpop.f32.mrb[0].mxu0
        %v483 = vadd.f32 %v384, %v482
        %v484 = vpop.f32.mrb[0].mxu0
        %v485 = vadd.f32 %v384, %v484
        %486 = vmatprep.mubr.f32.mxu0 0.0
        %487 = vmatmul.mubr.f32.gmra.mrb[0].mxu0 %v402
        %v488 = vpop.f32.mrb[0].mxu0
        %v489 = vadd.f32 %v389, %v488
        %v490 = vpop.f32.mrb[0].mxu0
        %v491 = vadd.f32 %v389, %v490
        %492 = vdwg.mxu0
        %v493 = vmax.f32 %v471, 0.0
        %v494 = vmax.f32 %v473, 0.0
        %v495 = vmax.f32 %v477, 0.0
        %v496 = vmax.f32 %v479, 0.0
        %v497 = vmax.f32 %v483, 0.0
        %v498 = vmax.f32 %v485, 0.0
        %v499 = vmax.f32 %v489, 0.0
        %v500 = vmax.f32 %v491, 0.0
        %501 = vrot.lane.b32.xlu0 %v493, 2
        %v502 = vpop.permute.xlu0 %501
        %503 = vrot.lane.b32.xlu0 %v495, 2
        %v504 = vpop.permute.xlu0 %503
        %505 = vrot.lane.b32.xlu0 %v497, 2
        %v506 = vpop.permute.xlu0 %505
        %507 = vrot.lane.b32.xlu0 %v499, 2
        %v508 = vpop.permute.xlu0 %507
        %509 = vrot.lane.b32.xlu0 %v494, 2
        %v510 = vpop.permute.xlu0 %509
        %511 = vrot.lane.b32.xlu0 %v496, 2
        %v512 = vpop.permute.xlu0 %511
        %513 = vrot.lane.b32.xlu0 %v498, 2
        %v514 = vpop.permute.xlu0 %513
        %515 = vrot.lane.b32.xlu0 %v500, 2
        %v516 = vpop.permute.xlu0 %515
        %v517 = vlaneseq
        %v518 = vand.u32 %v517, 127
        %vm519 = vcmp.lt.s32.totalorder %v518, 2
        %v520 = vsel %vm519, %v502, %v510
        %v521 = vsel %vm519, %v504, %v512
        %v522 = vsel %vm519, %v506, %v514
        %v523 = vsel %vm519, %v508, %v516
        %v524 = vsel %vm519, %v510, %v502
        %v525 = vsel %vm519, %v512, %v504
        %v526 = vsel %vm519, %v514, %v506
        %v527 = vsel %vm519, %v516, %v508
        %v528 = vld [vmem:[%s8] ss:$4 sm:$0x3]
        %v530 = vlaneseq
        %v531 = vshrl.u32 %v530, 7
        %v532 = vsub.s32 0, %v531
        %v533 = vrot.slane %v528, %v532
        %v534 = vlaneseq
        %v535 = vshrl.u32 %v534, 7
        %v536 = vsub.s32 1, %v535
        %v537 = vrot.slane %v528, %v536
        %v540 = vmul.f32 %v524, %v533
        %v541 = vmul.f32 %v520, %v537
        %v542 = vmul.f32 %v525, %v533
        %v543 = vmul.f32 %v521, %v537
        %v544 = vmul.f32 %v526, %v533
        %v545 = vmul.f32 %v522, %v537
        %v546 = vmul.f32 %v527, %v533
        %v547 = vmul.f32 %v523, %v537
        %548 = vrot.lane.b32.xlu0 %v493, 126
        %v549 = vpop.permute.xlu0 %548
        %550 = vrot.lane.b32.xlu0 %v495, 126
        %v551 = vpop.permute.xlu0 %550
        %552 = vrot.lane.b32.xlu0 %v497, 126
        %v553 = vpop.permute.xlu0 %552
        %554 = vrot.lane.b32.xlu0 %v499, 126
        %v555 = vpop.permute.xlu0 %554
        %556 = vrot.lane.b32.xlu0 %v494, 126
        %v557 = vpop.permute.xlu0 %556
        %558 = vrot.lane.b32.xlu0 %v496, 126
        %v559 = vpop.permute.xlu0 %558
        %560 = vrot.lane.b32.xlu0 %v498, 126
        %v561 = vpop.permute.xlu0 %560
        %562 = vrot.lane.b32.xlu0 %v500, 126
        %v563 = vpop.permute.xlu0 %562
        %vm564 = vcmp.lt.s32.totalorder %v518, 126
        %v565 = vsel %vm564, %v549, %v557
        %v566 = vsel %vm564, %v551, %v559
        %v567 = vsel %vm564, %v553, %v561
        %v568 = vsel %vm564, %v555, %v563
        %v569 = vsel %vm564, %v557, %v549
        %v570 = vsel %vm564, %v559, %v551
        %v571 = vsel %vm564, %v561, %v553
        %v572 = vsel %vm564, %v563, %v555
        %s573 = scalar_lea.vmem %s8, 2
        %v574 = vld [vmem:[%s573] ss:$4 sm:$0x3]
        %v576 = vlaneseq
        %v577 = vshrl.u32 %v576, 7
        %v578 = vsub.s32 0, %v577
        %v579 = vrot.slane %v574, %v578
        %v580 = vlaneseq
        %v581 = vshrl.u32 %v580, 7
        %v582 = vsub.s32 1, %v581
        %v583 = vrot.slane %v574, %v582
        %v586 = vmul.f32 %v565, %v579
        %v587 = vmul.f32 %v569, %v583
        %v588 = vmul.f32 %v566, %v579
        %v589 = vmul.f32 %v570, %v583
        %v590 = vmul.f32 %v567, %v579
        %v591 = vmul.f32 %v571, %v583
        %v592 = vmul.f32 %v568, %v579
        %v593 = vmul.f32 %v572, %v583
        %v594 = vld [vmem:[%s3] sm:$0xff]
        %v595 = vld [vmem:[%s3 + $0x8] sm:$0xff]
        %vm596 = vcmask 785408
        %v598 = vsel %vm596, %v594, 0
        %v601 = vsel %vm596, %v595, 0
        %603 = vmatprep.subr.mxu0 %v541
        %604 = vmatpush1.msra.mxu0 %v540
        %605 = vmatprep.subr.mxu0 %v543
        %606 = vmatpush1.msra.mxu0 %v542
        %607 = vmatprep.subr.mxu0 %v545
        %608 = vmatpush1.msra.mxu0 %v544
        %609 = vmatprep.subr.mxu0 %v547
        %610 = vmatpush1.msra.mxu0 %v546
        %611 = vmatprep.subr.mxu0 %v494
        %612 = vmatpush1.msra.mxu0 %v493
        %613 = vmatprep.subr.mxu0 %v496
        %614 = vmatpush1.msra.mxu0 %v495
        %615 = vmatprep.subr.mxu0 %v498
        %616 = vmatpush1.msra.mxu0 %v497
        %617 = vmatprep.subr.mxu0 %v500
        %618 = vmatpush1.msra.mxu0 %v499
        %619 = vmatprep.subr.mxu0 %v587
        %620 = vmatpush1.msra.mxu0 %v586
        %621 = vmatprep.subr.mxu0 %v589
        %622 = vmatpush1.msra.mxu0 %v588
        %623 = vmatprep.subr.mxu0 %v591
        %624 = vmatpush1.msra.mxu0 %v590
        %625 = vmatprep.subr.mxu0 %v593
        %626 = vmatpush1.msra.mxu0 %v592
        %627 = vmatprep.subr.mxu0 0.0
        %628 = vmatpush1.msra.mxu0 0.0
        %629 = vmatprep.subr.mxu0 0.0
        %630 = vmatpush1.msra.mxu0 0.0
        %631 = vmatprep.subr.mxu0 0.0
        %632 = vmatpush1.msra.mxu0 0.0
        %633 = vmatprep.subr.mxu0 0.0
        %634 = vmatpush1.msra.mxu0 0.0
        %635 = vmatprep.subr.mxu0 0.0
        %636 = vmatpush1.msra.mxu0 0.0
        %637 = vmatprep.subr.mxu0 0.0
        %638 = vmatpush1.msra.mxu0 0.0
        %639 = vmatprep.subr.mxu0 0.0
        %640 = vmatpush1.msra.mxu0 0.0
        %641 = vmatprep.subr.mxu0 0.0
        %642 = vmatpush1.msra.mxu0 0.0
        %643 = vmatprep.subr.mxu0 0.0
        %644 = vmatpush1.msra.mxu0 0.0
        %645 = vmatprep.subr.mxu0 0.0
        %646 = vmatpush1.msra.mxu0 0.0
        %647 = vmatprep.subr.mxu0 0.0
        %648 = vmatpush1.msra.mxu0 0.0
        %649 = vmatprep.subr.mxu0 0.0
        %650 = vmatpush1.msra.mxu0 0.0
        %651 = vmatprep.subr.mxu0 0.0
        %652 = vmatpush1.msra.mxu0 0.0
        %653 = vmatprep.subr.mxu0 0.0
        %654 = vmatpush1.msra.mxu0 0.0
        %655 = vmatprep.subr.mxu0 0.0
        %656 = vmatpush1.msra.mxu0 0.0
        %657 = vmatprep.subr.mxu0 0.0
        %658 = vmatpush1.msra.mxu0 0.0
        %659 = vmatprep.subr.mxu0 0.0
        %660 = vmatpush1.msra.mxu0 0.0
        %661 = vmatprep.subr.mxu0 0.0
        %662 = vmatpush1.msra.mxu0 0.0
        %663 = vmatprep.subr.mxu0 0.0
        %664 = vmatpush1.msra.mxu0 0.0
        %665 = vmatprep.subr.mxu0 0.0
        %666 = vmatpush1.msra.mxu0 0.0
        %667 = vmatprep.mubr.f32.mxu0 0.0
        %668 = vmatmul.mubr.f32.gmra.mrb[0].mxu0 %v598
        %v669 = vpop.f32.mrb[0].mxu0
        %v670 = vadd.f32 0.0, %v669
        %v671 = vpop.f32.mrb[0].mxu0
        %v672 = vadd.f32 0.0, %v671
        %673 = vmatprep.mubr.f32.mxu0 0.0
        %674 = vmatmul.mubr.f32.gmra.mrb[0].mxu0 %v601
        %v675 = vpop.f32.mrb[0].mxu0
        %v676 = vadd.f32 0.0, %v675
        %v677 = vpop.f32.mrb[0].mxu0
        %v678 = vadd.f32 0.0, %v677
        %679 = vdwg.mxu0
        %v680 = vld [vmem:[%s6] sm:$0xff]
        %v681 = vld [vmem:[%s6 + $0x8] sm:$0xff]
        %v682 = vld [vmem:[%s6 + $0x10] sm:$0xff]
        %v683 = vld [vmem:[%s6 + $0x18] sm:$0xff]
        %v684 = vld [vmem:[%s6 + $0x20] sm:$0xff]
        %v685 = vld [vmem:[%s6 + $0x28] sm:$0xff]
        %v686 = vld [vmem:[%s6 + $0x30] sm:$0xff]
        %v687 = vld [vmem:[%s6 + $0x38] sm:$0xff]
        %v688 = vld [vmem:[%s6 + $0x40] sm:$0xff]
        %v689 = vld [vmem:[%s6 + $0x48] sm:$0xff]
        %v690 = vld [vmem:[%s6 + $0x50] sm:$0xff]
        %v691 = vld [vmem:[%s6 + $0x58] sm:$0xff]
        %v692 = vld [vmem:[%s6 + $0x60] sm:$0xff]
        %v693 = vld [vmem:[%s6 + $0x68] sm:$0xff]
        %v694 = vld [vmem:[%s6 + $0x70] sm:$0xff]
        %v695 = vld [vmem:[%s6 + $0x78] sm:$0xff]
        %v696 = vld [vmem:[%s6 + $0x80] sm:$0xff]
        %v697 = vld [vmem:[%s6 + $0x88] sm:$0xff]
        %v698 = vld [vmem:[%s6 + $0x90] sm:$0xff]
        %v699 = vld [vmem:[%s6 + $0x98] sm:$0xff]
        %v700 = vld [vmem:[%s6 + $0xa0] sm:$0xff]
        %v701 = vld [vmem:[%s6 + $0xa8] sm:$0xff]
        %v702 = vld [vmem:[%s6 + $0xb0] sm:$0xff]
        %v703 = vld [vmem:[%s6 + $0xb8] sm:$0xff]
        %v704 = vld [vmem:[%s6 + $0xc0] sm:$0xff]
        %v705 = vld [vmem:[%s6 + $0xc8] sm:$0xff]
        %v706 = vld [vmem:[%s6 + $0xd0] sm:$0xff]
        %v707 = vld [vmem:[%s6 + $0xd8] sm:$0xff]
        %v708 = vld [vmem:[%s6 + $0xe0] sm:$0xff]
        %v709 = vld [vmem:[%s6 + $0xe8] sm:$0xff]
        %v710 = vld [vmem:[%s6 + $0xf0] sm:$0xff]
        %v711 = vld [vmem:[%s6 + $0xf8] sm:$0xff]
        %712 = vmatprep.subr.mxu0 0.0
        %713 = vmatpush1.msra.mxu0 %v680
        %714 = vmatprep.subr.mxu0 0.0
        %715 = vmatpush1.msra.mxu0 %v681
        %716 = vmatprep.subr.mxu0 0.0
        %717 = vmatpush1.msra.mxu0 %v682
        %718 = vmatprep.subr.mxu0 0.0
        %719 = vmatpush1.msra.mxu0 %v683
        %720 = vmatprep.subr.mxu0 0.0
        %721 = vmatpush1.msra.mxu0 %v684
        %722 = vmatprep.subr.mxu0 0.0
        %723 = vmatpush1.msra.mxu0 %v685
        %724 = vmatprep.subr.mxu0 0.0
        %725 = vmatpush1.msra.mxu0 %v686
        %726 = vmatprep.subr.mxu0 0.0
        %727 = vmatpush1.msra.mxu0 %v687
        %728 = vmatprep.subr.mxu0 0.0
        %729 = vmatpush1.msra.mxu0 %v688
        %730 = vmatprep.subr.mxu0 0.0
        %731 = vmatpush1.msra.mxu0 %v689
        %732 = vmatprep.subr.mxu0 0.0
        %733 = vmatpush1.msra.mxu0 %v690
        %734 = vmatprep.subr.mxu0 0.0
        %735 = vmatpush1.msra.mxu0 %v691
        %736 = vmatprep.subr.mxu0 0.0
        %737 = vmatpush1.msra.mxu0 %v692
        %738 = vmatprep.subr.mxu0 0.0
        %739 = vmatpush1.msra.mxu0 %v693
        %740 = vmatprep.subr.mxu0 0.0
        %741 = vmatpush1.msra.mxu0 %v694
        %742 = vmatprep.subr.mxu0 0.0
        %743 = vmatpush1.msra.mxu0 %v695
        %744 = vmatprep.subr.mxu0 0.0
        %745 = vmatpush1.msra.mxu0 %v696
        %746 = vmatprep.subr.mxu0 0.0
        %747 = vmatpush1.msra.mxu0 %v697
        %748 = vmatprep.subr.mxu0 0.0
        %749 = vmatpush1.msra.mxu0 %v698
        %750 = vmatprep.subr.mxu0 0.0
        %751 = vmatpush1.msra.mxu0 %v699
        %752 = vmatprep.subr.mxu0 0.0
        %753 = vmatpush1.msra.mxu0 %v700
        %754 = vmatprep.subr.mxu0 0.0
        %755 = vmatpush1.msra.mxu0 %v701
        %756 = vmatprep.subr.mxu0 0.0
        %757 = vmatpush1.msra.mxu0 %v702
        %758 = vmatprep.subr.mxu0 0.0
        %759 = vmatpush1.msra.mxu0 %v703
        %760 = vmatprep.subr.mxu0 0.0
        %761 = vmatpush1.msra.mxu0 %v704
        %762 = vmatprep.subr.mxu0 0.0
        %763 = vmatpush1.msra.mxu0 %v705
        %764 = vmatprep.subr.mxu0 0.0
        %765 = vmatpush1.msra.mxu0 %v706
        %766 = vmatprep.subr.mxu0 0.0
        %767 = vmatpush1.msra.mxu0 %v707
        %768 = vmatprep.subr.mxu0 0.0
        %769 = vmatpush1.msra.mxu0 %v708
        %770 = vmatprep.subr.mxu0 0.0
        %771 = vmatpush1.msra.mxu0 %v709
        %772 = vmatprep.subr.mxu0 0.0
        %773 = vmatpush1.msra.mxu0 %v710
        %774 = vmatprep.subr.mxu0 0.0
        %775 = vmatpush1.msra.mxu0 %v711
        %776 = vmatprep.mubr.f32.mxu0 %v494
        %777 = vmatmul.mubr.f32.gmra.mrb[0].mxu0 %v493
        %v778 = vpop.f32.mrb[0].mxu0
        %v779 = vadd.f32 0.0, %v778
        %v780 = vpop.f32.mrb[0].mxu0
        %781 = vmatprep.mubr.f32.mxu0 %v496
        %782 = vmatmul.mubr.f32.gmra.mrb[0].mxu0 %v495
        %v783 = vpop.f32.mrb[0].mxu0
        %v784 = vadd.f32 0.0, %v783
        %v785 = vpop.f32.mrb[0].mxu0
        %786 = vmatprep.mubr.f32.mxu0 %v498
        %787 = vmatmul.mubr.f32.gmra.mrb[0].mxu0 %v497
        %v788 = vpop.f32.mrb[0].mxu0
        %v789 = vadd.f32 0.0, %v788
        %v790 = vpop.f32.mrb[0].mxu0
        %791 = vmatprep.mubr.f32.mxu0 %v500
        %792 = vmatmul.mubr.f32.gmra.mrb[0].mxu0 %v499
        %v793 = vpop.f32.mrb[0].mxu0
        %v794 = vadd.f32 0.0, %v793
        %v795 = vpop.f32.mrb[0].mxu0
        %796 = vdwg.mxu0
        %v797 = vld [vmem:[%s4] sm:$0xff]
        %v798 = vld [vmem:[%s4 + $0x8] sm:$0xff]
        %799 = vset.pattern.permute.xlu0 3
        %800 = vperm.xlu0 %799, %v335
        %v801 = vpop.permute.xlu0 %800
        %803 = vset.pattern.permute.xlu0 3
        %804 = vperm.xlu0 %803, %v336
        %v805 = vpop.permute.xlu0 %804
        %vm807 = vcmask 261120
        %v809 = vsel %vm807, %v797, 0
        %v812 = vsel %vm807, %v798, 0
        %814 = vmatprep.subr.mxu0 0.0
        %815 = vmatpush1.msra.mxu0 %v779
        %816 = vmatprep.subr.mxu0 0.0
        %817 = vmatpush1.msra.mxu0 %v784
        %818 = vmatprep.subr.mxu0 0.0
        %819 = vmatpush1.msra.mxu0 %v789
        %820 = vmatprep.subr.mxu0 0.0
        %821 = vmatpush1.msra.mxu0 %v794
        %822 = vmatprep.subr.mxu0 0.0
        %823 = vmatpush1.msra.mxu0 0.0
        %824 = vmatprep.subr.mxu0 0.0
        %825 = vmatpush1.msra.mxu0 0.0
        %826 = vmatprep.subr.mxu0 0.0
        %827 = vmatpush1.msra.mxu0 0.0
        %828 = vmatprep.subr.mxu0 0.0
        %829 = vmatpush1.msra.mxu0 0.0
        %830 = vmatprep.subr.mxu0 0.0
        %831 = vmatpush1.msra.mxu0 0.0
        %832 = vmatprep.subr.mxu0 0.0
        %833 = vmatpush1.msra.mxu0 0.0
        %834 = vmatprep.subr.mxu0 0.0
        %835 = vmatpush1.msra.mxu0 0.0
        %836 = vmatprep.subr.mxu0 0.0
        %837 = vmatpush1.msra.mxu0 0.0
        %838 = vmatprep.subr.mxu0 0.0
        %839 = vmatpush1.msra.mxu0 0.0
        %840 = vmatprep.subr.mxu0 0.0
        %841 = vmatpush1.msra.mxu0 0.0
        %842 = vmatprep.subr.mxu0 0.0
        %843 = vmatpush1.msra.mxu0 0.0
        %844 = vmatprep.subr.mxu0 0.0
        %845 = vmatpush1.msra.mxu0 0.0
        %846 = vmatprep.subr.mxu0 0.0
        %847 = vmatpush1.msra.mxu0 0.0
        %848 = vmatprep.subr.mxu0 0.0
        %849 = vmatpush1.msra.mxu0 0.0
        %850 = vmatprep.subr.mxu0 0.0
        %851 = vmatpush1.msra.mxu0 0.0
        %852 = vmatprep.subr.mxu0 0.0
        %853 = vmatpush1.msra.mxu0 0.0
        %854 = vmatprep.subr.mxu0 0.0
        %855 = vmatpush1.msra.mxu0 0.0
        %856 = vmatprep.subr.mxu0 0.0
        %857 = vmatpush1.msra.mxu0 0.0
        %858 = vmatprep.subr.mxu0 0.0
        %859 = vmatpush1.msra.mxu0 0.0
        %860 = vmatprep.subr.mxu0 0.0
        %861 = vmatpush1.msra.mxu0 0.0
        %862 = vmatprep.subr.mxu0 0.0
        %863 = vmatpush1.msra.mxu0 0.0
        %864 = vmatprep.subr.mxu0 0.0
        %865 = vmatpush1.msra.mxu0 0.0
        %866 = vmatprep.subr.mxu0 0.0
        %867 = vmatpush1.msra.mxu0 0.0
        %868 = vmatprep.subr.mxu0 0.0
        %869 = vmatpush1.msra.mxu0 0.0
        %870 = vmatprep.subr.mxu0 0.0
        %871 = vmatpush1.msra.mxu0 0.0
        %872 = vmatprep.subr.mxu0 0.0
        %873 = vmatpush1.msra.mxu0 0.0
        %874 = vmatprep.subr.mxu0 0.0
        %875 = vmatpush1.msra.mxu0 0.0
        %876 = vmatprep.subr.mxu0 0.0
        %877 = vmatpush1.msra.mxu0 0.0
        %878 = vmatprep.mubr.f32.mxu0 0.0
        %879 = vmatmul.mubr.f32.gmra.mrb[0].mxu0 %v809
        %v880 = vpop.f32.mrb[0].mxu0
        %v881 = vadd.f32 %v801, %v880
        %v882 = vpop.f32.mrb[0].mxu0
        %883 = vmatprep.mubr.f32.mxu0 0.0
        %884 = vmatmul.mubr.f32.gmra.mrb[0].mxu0 %v812
        %v885 = vpop.f32.mrb[0].mxu0
        %v886 = vadd.f32 %v805, %v885
        %v887 = vpop.f32.mrb[0].mxu0
        %888 = vdwg.mxu0
        %v889 = vmax.f32 %v881, 0.0
        %v890 = vmax.f32 %v886, 0.0
        %v891 = vld [vmem:[%s5] sm:$0xff]
        %v892 = vld [vmem:[%s5 + $0x8] sm:$0xff]
        %893 = vset.pattern.permute.xlu0 4
        %894 = vperm.xlu0 %893, %v335
        %v895 = vpop.permute.xlu0 %894
        %897 = vset.pattern.permute.xlu0 4
        %898 = vperm.xlu0 %897, %v336
        %v899 = vpop.permute.xlu0 %898
        %v902 = vsel %vm391, %v891, 0
        %v905 = vsel %vm391, %v892, 0
        %907 = vmatprep.subr.mxu0 0.0
        %908 = vmatpush1.msra.mxu0 %v889
        %909 = vmatprep.subr.mxu0 0.0
        %910 = vmatpush1.msra.mxu0 %v890
        %911 = vmatprep.subr.mxu0 0.0
        %912 = vmatpush1.msra.mxu0 0.0
        %913 = vmatprep.subr.mxu0 0.0
        %914 = vmatpush1.msra.mxu0 0.0
        %915 = vmatprep.subr.mxu0 0.0
        %916 = vmatpush1.msra.mxu0 0.0
        %917 = vmatprep.subr.mxu0 0.0
        %918 = vmatpush1.msra.mxu0 0.0
        %919 = vmatprep.subr.mxu0 0.0
        %920 = vmatpush1.msra.mxu0 0.0
        %921 = vmatprep.subr.mxu0 0.0
        %922 = vmatpush1.msra.mxu0 0.0
        %923 = vmatprep.subr.mxu0 0.0
        %924 = vmatpush1.msra.mxu0 0.0
        %925 = vmatprep.subr.mxu0 0.0
        %926 = vmatpush1.msra.mxu0 0.0
        %927 = vmatprep.subr.mxu0 0.0
        %928 = vmatpush1.msra.mxu0 0.0
        %929 = vmatprep.subr.mxu0 0.0
        %930 = vmatpush1.msra.mxu0 0.0
        %931 = vmatprep.subr.mxu0 0.0
        %932 = vmatpush1.msra.mxu0 0.0
        %933 = vmatprep.subr.mxu0 0.0
        %934 = vmatpush1.msra.mxu0 0.0
        %935 = vmatprep.subr.mxu0 0.0
        %936 = vmatpush1.msra.mxu0 0.0
        %937 = vmatprep.subr.mxu0 0.0
        %938 = vmatpush1.msra.mxu0 0.0
        %939 = vmatprep.subr.mxu0 0.0
        %940 = vmatpush1.msra.mxu0 0.0
        %941 = vmatprep.subr.mxu0 0.0
        %942 = vmatpush1.msra.mxu0 0.0
        %943 = vmatprep.subr.mxu0 0.0
        %944 = vmatpush1.msra.mxu0 0.0
        %945 = vmatprep.subr.mxu0 0.0
        %946 = vmatpush1.msra.mxu0 0.0
        %947 = vmatprep.subr.mxu0 0.0
        %948 = vmatpush1.msra.mxu0 0.0
        %949 = vmatprep.subr.mxu0 0.0
        %950 = vmatpush1.msra.mxu0 0.0
        %951 = vmatprep.subr.mxu0 0.0
        %952 = vmatpush1.msra.mxu0 0.0
        %953 = vmatprep.subr.mxu0 0.0
        %954 = vmatpush1.msra.mxu0 0.0
        %955 = vmatprep.subr.mxu0 0.0
        %956 = vmatpush1.msra.mxu0 0.0
        %957 = vmatprep.subr.mxu0 0.0
        %958 = vmatpush1.msra.mxu0 0.0
        %959 = vmatprep.subr.mxu0 0.0
        %960 = vmatpush1.msra.mxu0 0.0
        %961 = vmatprep.subr.mxu0 0.0
        %962 = vmatpush1.msra.mxu0 0.0
        %963 = vmatprep.subr.mxu0 0.0
        %964 = vmatpush1.msra.mxu0 0.0
        %965 = vmatprep.subr.mxu0 0.0
        %966 = vmatpush1.msra.mxu0 0.0
        %967 = vmatprep.subr.mxu0 0.0
        %968 = vmatpush1.msra.mxu0 0.0
        %969 = vmatprep.subr.mxu0 0.0
        %970 = vmatpush1.msra.mxu0 0.0
        %971 = vmatprep.mubr.f32.mxu0 0.0
        %972 = vmatmul.mubr.f32.gmra.mrb[0].mxu0 %v902
        %v973 = vpop.f32.mrb[0].mxu0
        %v974 = vadd.f32 %v895, %v973
        %v975 = vpop.f32.mrb[0].mxu0
        %976 = vmatprep.mubr.f32.mxu0 0.0
        %977 = vmatmul.mubr.f32.gmra.mrb[0].mxu0 %v905
        %v978 = vpop.f32.mrb[0].mxu0
        %v979 = vadd.f32 %v899, %v978
        %v980 = vpop.f32.mrb[0].mxu0
        %981 = vdwg.mxu0
        %v982 = vxor.u32 %v974, 2147483648
        %v983 = vxor.u32 %v979, 2147483648
        %v984 = vmul.f32 %v982, 1.442695
        %v985 = vpow.pop %v984
        %v986 = vmul.f32 %v983, 1.442695
        %v987 = vpow.pop %v986
        %v988 = vadd.f32 %v985, 1.0
        %v989 = vadd.f32 %v987, 1.0
        %v990 = vrcp.pop %v988
        %v991 = vmul.f32 1.0, %v990
        %v992 = vrcp.pop %v989
        %v993 = vmul.f32 1.0, %v992
        %v994 = vld [vmem:[%s7] sm:$0x77]
        %v996 = vcombine.high %v994, %v994
        %vm997 = vcmask 23552
        %v999 = vsel %vm997, %v991, 0
        %v1002 = vsel %vm997, %v993, 0
        %vm1004 = vcmask 1042432
        %v1005 = vsel %vm1004, %v994, 0
        %v1007 = vsel %vm1004, %v996, 0
        %1009 = vmatprep.subr.mxu0 %v1007
        %1010 = vmatpush1.msra.mxu0 %v1005
        %1011 = vmatprep.subr.mxu0 0.0
        %1012 = vmatpush1.msra.mxu0 0.0
        %1013 = vmatprep.subr.mxu0 0.0
        %1014 = vmatpush1.msra.mxu0 0.0
        %1015 = vmatprep.subr.mxu0 0.0
        %1016 = vmatpush1.msra.mxu0 0.0
        %1017 = vmatprep.subr.mxu0 0.0
        %1018 = vmatpush1.msra.mxu0 0.0
        %1019 = vmatprep.subr.mxu0 0.0
        %1020 = vmatpush1.msra.mxu0 0.0
        %1021 = vmatprep.subr.mxu0 0.0
        %1022 = vmatpush1.msra.mxu0 0.0
        %1023 = vmatprep.subr.mxu0 0.0
        %1024 = vmatpush1.msra.mxu0 0.0
        %1025 = vmatprep.subr.mxu0 0.0
        %1026 = vmatpush1.msra.mxu0 0.0
        %1027 = vmatprep.subr.mxu0 0.0
        %1028 = vmatpush1.msra.mxu0 0.0
        %1029 = vmatprep.subr.mxu0 0.0
        %1030 = vmatpush1.msra.mxu0 0.0
        %1031 = vmatprep.subr.mxu0 0.0
        %1032 = vmatpush1.msra.mxu0 0.0
        %1033 = vmatprep.subr.mxu0 0.0
        %1034 = vmatpush1.msra.mxu0 0.0
        %1035 = vmatprep.subr.mxu0 0.0
        %1036 = vmatpush1.msra.mxu0 0.0
        %1037 = vmatprep.subr.mxu0 0.0
        %1038 = vmatpush1.msra.mxu0 0.0
        %1039 = vmatprep.subr.mxu0 0.0
        %1040 = vmatpush1.msra.mxu0 0.0
        %1041 = vmatprep.subr.mxu0 0.0
        %1042 = vmatpush1.msra.mxu0 0.0
        %1043 = vmatprep.subr.mxu0 0.0
        %1044 = vmatpush1.msra.mxu0 0.0
        %1045 = vmatprep.subr.mxu0 0.0
        %1046 = vmatpush1.msra.mxu0 0.0
        %1047 = vmatprep.subr.mxu0 0.0
        %1048 = vmatpush1.msra.mxu0 0.0
        %1049 = vmatprep.subr.mxu0 0.0
        %1050 = vmatpush1.msra.mxu0 0.0
        %1051 = vmatprep.subr.mxu0 0.0
        %1052 = vmatpush1.msra.mxu0 0.0
        %1053 = vmatprep.subr.mxu0 0.0
        %1054 = vmatpush1.msra.mxu0 0.0
        %1055 = vmatprep.subr.mxu0 0.0
        %1056 = vmatpush1.msra.mxu0 0.0
        %1057 = vmatprep.subr.mxu0 0.0
        %1058 = vmatpush1.msra.mxu0 0.0
        %1059 = vmatprep.subr.mxu0 0.0
        %1060 = vmatpush1.msra.mxu0 0.0
        %1061 = vmatprep.subr.mxu0 0.0
        %1062 = vmatpush1.msra.mxu0 0.0
        %1063 = vmatprep.subr.mxu0 0.0
        %1064 = vmatpush1.msra.mxu0 0.0
        %1065 = vmatprep.subr.mxu0 0.0
        %1066 = vmatpush1.msra.mxu0 0.0
        %1067 = vmatprep.subr.mxu0 0.0
        %1068 = vmatpush1.msra.mxu0 0.0
        %1069 = vmatprep.subr.mxu0 0.0
        %1070 = vmatpush1.msra.mxu0 0.0
        %1071 = vmatprep.subr.mxu0 0.0
        %1072 = vmatpush1.msra.mxu0 0.0
        %1073 = vmatprep.mubr.f32.mxu0 0.0
        %1074 = vmatmul.mubr.f32.gmra.mrb[0].mxu0 %v999
        %v1075 = vpop.f32.mrb[0].mxu0
        %v1076 = vadd.f32 0.0, %v1075
        %v1077 = vpop.f32.mrb[0].mxu0
        %v1078 = vadd.f32 0.0, %v1077
        %1079 = vmatprep.mubr.f32.mxu0 0.0
        %1080 = vmatmul.mubr.f32.gmra.mrb[0].mxu0 %v1002
        %v1081 = vpop.f32.mrb[0].mxu0
        %v1082 = vadd.f32 0.0, %v1081
        %v1083 = vpop.f32.mrb[0].mxu0
        %v1084 = vadd.f32 0.0, %v1083
        %1085 = vdwg.mxu0
        %v1086 = vmul.f32 %v670, %v1076
        %v1087 = vmul.f32 %v672, %v1078
        %v1088 = vmul.f32 %v676, %v1082
        %v1089 = vmul.f32 %v678, %v1084
        %1090 = vst [vmem:[%s325] sm:$0xff] %v1086
        %1091 = vst [vmem:[%s325 + $0x8] sm:$0xff] %v1087
        %1092 = vst [vmem:[%s325 + $0x10] sm:$0xff] %v1088
        %1093 = vst [vmem:[%s325 + $0x18] sm:$0xff] %v1089
        %s1094 = sand.u32 %s225, 1
        %s1095 = scalar_lea.sflag [#allocation3], %s1094
        %s1096 = sand.u32 %s225, 1
        %s1097 = smul.addr %s1096, 32
        %s1098 = scalar_lea.vmem [#allocation2], %s1097
        // Predicated region
        $region57: #{tpu_custom_call.1} parent=55 // pred_check
          %p1099 = pneg %p235
        $region58: #{tpu_custom_call.1} parent=55 // pred_check_branch
          %1101 = sbr.rel (%p1099) target = $region60
        $region59: #{tpu_custom_call.1} parent=55 // pred_region
          %s1103 = ssub.s32 512, 512
          %1104 = vsyncadd %s1095, %s1103
          %s1105 = smul.addr %s23, 4
          %s1106 = smul.addr %s1105, 128
          %s1107 = scalar_lea.hbm %s9, %s1106
          %s1108 = sshll.u32 %s1098, 4
          %s1109 = int_to_ptr.vmem [resolvable:$true] %s1108
          %1114 = dma.vmem_to_hbm [thread:$0]  %s1109, 512, %s1107, %s1095, 256, 256, 16
        $region60: #{tpu_custom_call.1} parent=55 // pred_fallthru
          _
      $region56: #{tpu_custom_call.1} parent=5 // pred_fallthru
        _
      %p1115 = scmp.le.s32.totalorder 2, %s18
      // Predicated region
      $region61: #{tpu_custom_call.1} parent=5 // pred_check
        %p1116 = pneg %p1115
      $region62: #{tpu_custom_call.1} parent=5 // pred_check_branch
        %1118 = sbr.rel (%p1116) target = $region64
      $region63: #{tpu_custom_call.1} parent=5 // pred_region
        %s1119 = ssub.s32 %s18, 2
        // Predicated region
        $region65: #{tpu_custom_call.1} parent=63 // pred_check
          %p1120 = pneg %p241
        $region66: #{tpu_custom_call.1} parent=63 // pred_check_branch
          %1122 = sbr.rel (%p1120) target = $region68
        $region67: #{tpu_custom_call.1} parent=63 // pred_region
          %s1123 = sand.u32 %s226, 1
          %s1124 = scalar_lea.sflag [#allocation3], %s1123
          %s1125 = sand.u32 %s226, 1
          %s1126 = smul.addr %s1125, 32
          %s1127 = scalar_lea.vmem [#allocation2], %s1126
          %1128 = dma.done %s1124, 512
        $region68: #{tpu_custom_call.1} parent=63 // pred_fallthru
          _
      $region64: #{tpu_custom_call.1} parent=5 // pred_fallthru
        _
    $region6: #{tpu_custom_call.1} parent=1 // loop_footer
      %s22 = sadd.s32 1, %s18
    $region7: #{tpu_custom_call.1} parent=1 // loop_footer_branch
      %17 = sbr.rel target = $region3
    $region8: #{tpu_custom_call.1} parent=1 // loop_exit
      _
    %1129 = vsyncpa [#allocation3], 1
    %s1130 = scalar_lea.sflag [#allocation3], 1
    %1131 = vsyncpa %s1130, 1

// kernel: tpu_custom_call.1
$region0: #{tpu_custom_call.1}
  #allocation0 [shape = 'u32[]', space=smem, size = 0x4, offset = 0x4, fixed_abs, tag = 'smem constant byte address 0x4 - core index']
  #allocation1 [shape = 'u32[144,128]{1,0:T(1,128)}', space=vmem, size = 0x12000, scoped, tag = 'internal scratch']
  %s0 = inlined_call_operand.vmem [shape: f32[2,16,256], index: 0, kind: input, shape index: {}]
  %s1 = inlined_call_operand.vmem [shape: f32[32,5], index: 1, kind: input, shape index: {}]
  %s2 = inlined_call_operand.vmem [shape: f32[32,16], index: 2, kind: input, shape index: {}]
  %s3 = inlined_call_operand.vmem [shape: f32[16,96], index: 3, kind: input, shape index: {}]
  %s4 = inlined_call_operand.vmem [shape: f32[16,32], index: 4, kind: input, shape index: {}]
  %s5 = inlined_call_operand.vmem [shape: f32[16,16], index: 5, kind: input, shape index: {}]
  %s6 = inlined_call_operand.vmem [shape: f32[256,3], index: 6, kind: input, shape index: {}]
  %s7 = inlined_call_operand.vmem [shape: f32[3,256], index: 7, kind: input, shape index: {}]
  %s8 = inlined_call_operand.vmem [shape: f32[3,256], index: 8, kind: input, shape index: {}]
  %s9 = inlined_call_operand.hbm [shape: f32[2,16,256], index: 9, kind: output, shape index: {}]
  %s10 = sld [smem:[#allocation0]]
  $region69: #{tpu_custom_call.1} parent=0
    _
  %s12 = ssub.s32 1, %s10
  %s13 = scalar_select 0, %s12, %s10
  $region1: #{tpu_custom_call.1} parent=0
    #allocation2 [shape = 'u8[32768]{0}', space=vmem, size = 0x8000, scoped, tag = 'output window, operand 0']
    #allocation3 [shape = 's32[2]{0}', space=sflag, size = 0x8, scoped, tag = 'scoped memory for tpu_custom_call.1']
    %14 = vsyncpa [#allocation3], 0
    %s15 = scalar_lea.sflag [#allocation3], 1
    %16 = vsyncpa %s15, 0
    loop: start=0, step=1, limit=4
    $region2: #{tpu_custom_call.1} parent=1 // loop_pre_header
      _
    $region3: #{tpu_custom_call.1} parent=1 // loop_header
      %s18 = sphi 0, %s22
      %p19 = scmp.ge.s32.totalorder %s18, 4
      %s28 = sphi 0, %s30
      %s31 = sphi 0, %s28
      %s32 = sphi 0, %s31
      %s48 = sphi 0, %s32
      %s52 = sphi 0, %s52
      %s54 = sphi 0, %s52
      %s55 = sphi 0, %s54
      %s69 = sphi 0, %s55
      %s73 = sphi 0, %s73
      %s75 = sphi 0, %s73
      %s76 = sphi 0, %s75
      %s90 = sphi 0, %s76
      %s94 = sphi 0, %s94
      %s96 = sphi 0, %s94
      %s97 = sphi 0, %s96
      %s111 = sphi 0, %s97
      %s115 = sphi 0, %s115
      %s117 = sphi 0, %s115
      %s118 = sphi 0, %s117
      %s132 = sphi 0, %s118
      %s136 = sphi 0, %s136
      %s138 = sphi 0, %s136
      %s139 = sphi 0, %s138
      %s153 = sphi 0, %s139
      %s157 = sphi 0, %s157
      %s159 = sphi 0, %s157
      %s160 = sphi 0, %s159
      %s174 = sphi 0, %s160
      %s178 = sphi 0, %s178
      %s180 = sphi 0, %s178
      %s181 = sphi 0, %s180
      %s195 = sphi 0, %s181
      %s199 = sphi 0, %s199
      %s201 = sphi 0, %s199
      %s202 = sphi 0, %s201
      %s216 = sphi 0, %s202
      %s222 = sphi 0, %s224
      %s225 = sphi 0, %s222
      %s226 = sphi 0, %s225
      %s242 = sphi 0, %s226
    $region4: #{tpu_custom_call.1} parent=1 // loop_header_branch
      %21 = sbr.rel (%p19) target = $region8
    $region5: #{tpu_custom_call.1} parent=1 // loop_body
      %s23 = ssub.s32 %s18, 1
      %s24 = ssub.s32 %s18, 2
      %s25 = sadd.s32 %s18, 1
      %s26 = ssub.s32 %s18, %s25
      %p27 = scmp.eq.s32.totalorder %s26, 0
      %s29 = sadd.s32 %s28, 1
      %s30 = scalar_select %p27, %s28, %s29
      %p33 = pneg %p27
      %p34 = scmp.eq.s32.totalorder %s18, 1
      %p35 = por %p33, %p34
      %p36 = scmp.ne.s32.totalorder %s28, %s31
      %p37 = scmp.eq.s32.totalorder %s18, 0
      %p38 = por %p36, %p37
      %p39 = scmp.ne.s32.totalorder %s28, %s31
      %p40 = scmp.eq.s32.totalorder %s23, 1
      %p41 = por %p39, %p40
      %p42 = scmp.ne.s32.totalorder %s31, %s32
      %p43 = scmp.eq.s32.totalorder %s23, 0
      %p44 = por %p42, %p43
      %p45 = scmp.ne.s32.totalorder %s31, %s32
      %p46 = scmp.eq.s32.totalorder %s24, 1
      %p47 = por %p45, %p46
      %p49 = scmp.ne.s32.totalorder %s32, %s48
      %p50 = scmp.eq.s32.totalorder %s24, 0
      %p51 = por %p49, %p50
      %s53 = sadd.s32 %s52, 1
      %p56 = scmp.eq.s32.totalorder %s18, 1
      %p57 = scmp.ne.s32.totalorder %s52, %s54
      %p58 = scmp.eq.s32.totalorder %s18, 0
      %p59 = por %p57, %p58
      %p60 = scmp.ne.s32.totalorder %s52, %s54
      %p61 = scmp.eq.s32.totalorder %s23, 1
      %p62 = por %p60, %p61
      %p63 = scmp.ne.s32.totalorder %s54, %s55
      %p64 = scmp.eq.s32.totalorder %s23, 0
      %p65 = por %p63, %p64
      %p66 = scmp.ne.s32.totalorder %s54, %s55
      %p67 = scmp.eq.s32.totalorder %s24, 1
      %p68 = por %p66, %p67
      %p70 = scmp.ne.s32.totalorder %s55, %s69
      %p71 = scmp.eq.s32.totalorder %s24, 0
      %p72 = por %p70, %p71
      %s74 = sadd.s32 %s73, 1
      %p77 = scmp.eq.s32.totalorder %s18, 1
      %p78 = scmp.ne.s32.totalorder %s73, %s75
      %p79 = scmp.eq.s32.totalorder %s18, 0
      %p80 = por %p78, %p79
      %p81 = scmp.ne.s32.totalorder %s73, %s75
      %p82 = scmp.eq.s32.totalorder %s23, 1
      %p83 = por %p81, %p82
      %p84 = scmp.ne.s32.totalorder %s75, %s76
      %p85 = scmp.eq.s32.totalorder %s23, 0
      %p86 = por %p84, %p85
      %p87 = scmp.ne.s32.totalorder %s75, %s76
      %p88 = scmp.eq.s32.totalorder %s24, 1
      %p89 = por %p87, %p88
      %p91 = scmp.ne.s32.totalorder %s76, %s90
      %p92 = scmp.eq.s32.totalorder %s24, 0
      %p93 = por %p91, %p92
      %s95 = sadd.s32 %s94, 1
      %p98 = scmp.eq.s32.totalorder %s18, 1
      %p99 = scmp.ne.s32.totalorder %s94, %s96
      %p100 = scmp.eq.s32.totalorder %s18, 0
      %p101 = por %p99, %p100
      %p102 = scmp.ne.s32.totalorder %s94, %s96
      %p103 = scmp.eq.s32.totalorder %s23, 1
      %p104 = por %p102, %p103
      %p105 = scmp.ne.s32.totalorder %s96, %s97
      %p106 = scmp.eq.s32.totalorder %s23, 0
      %p107 = por %p105, %p106
      %p108 = scmp.ne.s32.totalorder %s96, %s97
      %p109 = scmp.eq.s32.totalorder %s24, 1
      %p110 = por %p108, %p109
      %p112 = scmp.ne.s32.totalorder %s97, %s111
      %p113 = scmp.eq.s32.totalorder %s24, 0
      %p114 = por %p112, %p113
      %s116 = sadd.s32 %s115, 1
      %p119 = scmp.eq.s32.totalorder %s18, 1
      %p120 = scmp.ne.s32.totalorder %s115, %s117
      %p121 = scmp.eq.s32.totalorder %s18, 0
      %p122 = por %p120, %p121
      %p123 = scmp.ne.s32.totalorder %s115, %s117
      %p124 = scmp.eq.s32.totalorder %s23, 1
      %p125 = por %p123, %p124
      %p126 = scmp.ne.s32.totalorder %s117, %s118
      %p127 = scmp.eq.s32.totalorder %s23, 0
      %p128 = por %p126, %p127
      %p129 = scmp.ne.s32.totalorder %s117, %s118
      %p130 = scmp.eq.s32.totalorder %s24, 1
      %p131 = por %p129, %p130
      %p133 = scmp.ne.s32.totalorder %s118, %s132
      %p134 = scmp.eq.s32.totalorder %s24, 0
      %p135 = por %p133, %p134
      %s137 = sadd.s32 %s136, 1
      %p140 = scmp.eq.s32.totalorder %s18, 1
      %p141 = scmp.ne.s32.totalorder %s136, %s138
      %p142 = scmp.eq.s32.totalorder %s18, 0
      %p143 = por %p141, %p142
      %p144 = scmp.ne.s32.totalorder %s136, %s138
      %p145 = scmp.eq.s32.totalorder %s23, 1
      %p146 = por %p144, %p145
      %p147 = scmp.ne.s32.totalorder %s138, %s139
      %p148 = scmp.eq.s32.totalorder %s23, 0
      %p149 = por %p147, %p148
      %p150 = scmp.ne.s32.totalorder %s138, %s139
      %p151 = scmp.eq.s32.totalorder %s24, 1
      %p152 = por %p150, %p151
      %p154 = scmp.ne.s32.totalorder %s139, %s153
      %p155 = scmp.eq.s32.totalorder %s24, 0
      %p156 = por %p154, %p155
      %s158 = sadd.s32 %s157, 1
      %p161 = scmp.eq.s32.totalorder %s18, 1
      %p162 = scmp.ne.s32.totalorder %s157, %s159
      %p163 = scmp.eq.s32.totalorder %s18, 0
      %p164 = por %p162, %p163
      %p165 = scmp.ne.s32.totalorder %s157, %s159
      %p166 = scmp.eq.s32.totalorder %s23, 1
      %p167 = por %p165, %p166
      %p168 = scmp.ne.s32.totalorder %s159, %s160
      %p169 = scmp.eq.s32.totalorder %s23, 0
      %p170 = por %p168, %p169
      %p171 = scmp.ne.s32.totalorder %s159, %s160
      %p172 = scmp.eq.s32.totalorder %s24, 1
      %p173 = por %p171, %p172
      %p175 = scmp.ne.s32.totalorder %s160, %s174
      %p176 = scmp.eq.s32.totalorder %s24, 0
      %p177 = por %p175, %p176
      %s179 = sadd.s32 %s178, 1
      %p182 = scmp.eq.s32.totalorder %s18, 1
      %p183 = scmp.ne.s32.totalorder %s178, %s180
      %p184 = scmp.eq.s32.totalorder %s18, 0
      %p185 = por %p183, %p184
      %p186 = scmp.ne.s32.totalorder %s178, %s180
      %p187 = scmp.eq.s32.totalorder %s23, 1
      %p188 = por %p186, %p187
      %p189 = scmp.ne.s32.totalorder %s180, %s181
      %p190 = scmp.eq.s32.totalorder %s23, 0
      %p191 = por %p189, %p190
      %p192 = scmp.ne.s32.totalorder %s180, %s181
      %p193 = scmp.eq.s32.totalorder %s24, 1
      %p194 = por %p192, %p193
      %p196 = scmp.ne.s32.totalorder %s181, %s195
      %p197 = scmp.eq.s32.totalorder %s24, 0
      %p198 = por %p196, %p197
      %s200 = sadd.s32 %s199, 1
      %p203 = scmp.eq.s32.totalorder %s18, 1
      %p204 = scmp.ne.s32.totalorder %s199, %s201
      %p205 = scmp.eq.s32.totalorder %s18, 0
      %p206 = por %p204, %p205
      %p207 = scmp.ne.s32.totalorder %s199, %s201
      %p208 = scmp.eq.s32.totalorder %s23, 1
      %p209 = por %p207, %p208
      %p210 = scmp.ne.s32.totalorder %s201, %s202
      %p211 = scmp.eq.s32.totalorder %s23, 0
      %p212 = por %p210, %p211
      %p213 = scmp.ne.s32.totalorder %s201, %s202
      %p214 = scmp.eq.s32.totalorder %s24, 1
      %p215 = por %p213, %p214
      %p217 = scmp.ne.s32.totalorder %s202, %s216
      %p218 = scmp.eq.s32.totalorder %s24, 0
      %p219 = por %p217, %p218
      %s220 = ssub.s32 %s18, %s25
      %p221 = scmp.eq.s32.totalorder %s220, 0
      %s223 = sadd.s32 %s222, 1
      %s224 = scalar_select %p221, %s222, %s223
      %p227 = pneg %p221
      %p228 = scmp.eq.s32.totalorder %s18, 1
      %p229 = por %p227, %p228
      %p230 = scmp.ne.s32.totalorder %s222, %s225
      %p231 = scmp.eq.s32.totalorder %s18, 0
      %p232 = por %p230, %p231
      %p233 = scmp.ne.s32.totalorder %s222, %s225
      %p234 = scmp.eq.s32.totalorder %s23, 1
      %p235 = por %p233, %p234
      %p236 = scmp.ne.s32.totalorder %s225, %s226
      %p237 = scmp.eq.s32.totalorder %s23, 0
      %p238 = por %p236, %p237
      %p239 = scmp.ne.s32.totalorder %s225, %s226
      %p240 = scmp.eq.s32.totalorder %s24, 1
      %p241 = por %p239, %p240
      %p243 = scmp.ne.s32.totalorder %s226, %s242
      %p244 = scmp.eq.s32.totalorder %s24, 0
      %p245 = por %p243, %p244
      %p246 = scmp.le.s32.totalorder 1, %s18
      %p247 = scmp.lt.s32.totalorder %s18, 3
      %p248 = pnand %p246, %p247
      %p249 = pneg %p248
      // Predicated region
      $region9: #{tpu_custom_call.1} parent=5 // pred_check
        _
      $region10: #{tpu_custom_call.1} parent=5 // pred_check_branch
        %251 = sbr.rel (%p248) target = $region12
      $region11: #{tpu_custom_call.1} parent=5 // pred_region
        %s252 = ssub.s32 %s18, 1
        // Predicated region
        $region13: #{tpu_custom_call.1} parent=11 // pred_check
          %p253 = pneg %p65
        $region14: #{tpu_custom_call.1} parent=11 // pred_check_branch
          %255 = sbr.rel (%p253) target = $region16
        $region15: #{tpu_custom_call.1} parent=11 // pred_region
          _
        $region16: #{tpu_custom_call.1} parent=11 // pred_fallthru
          _
        // Predicated region
        $region17: #{tpu_custom_call.1} parent=11 // pred_check
          %p256 = pneg %p86
        $region18: #{tpu_custom_call.1} parent=11 // pred_check_branch
          %258 = sbr.rel (%p256) target = $region20
        $region19: #{tpu_custom_call.1} parent=11 // pred_region
          _
        $region20: #{tpu_custom_call.1} parent=11 // pred_fallthru
          _
        // Predicated region
        $region21: #{tpu_custom_call.1} parent=11 // pred_check
          %p259 = pneg %p107
        $region22: #{tpu_custom_call.1} parent=11 // pred_check_branch
          %261 = sbr.rel (%p259) target = $region24
        $region23: #{tpu_custom_call.1} parent=11 // pred_region
          _
        $region24: #{tpu_custom_call.1} parent=11 // pred_fallthru
          _
        // Predicated region
        $region25: #{tpu_custom_call.1} parent=11 // pred_check
          %p262 = pneg %p128
        $region26: #{tpu_custom_call.1} parent=11 // pred_check_branch
          %264 = sbr.rel (%p262) target = $region28
        $region27: #{tpu_custom_call.1} parent=11 // pred_region
          _
        $region28: #{tpu_custom_call.1} parent=11 // pred_fallthru
          _
        // Predicated region
        $region29: #{tpu_custom_call.1} parent=11 // pred_check
          %p265 = pneg %p149
        $region30: #{tpu_custom_call.1} parent=11 // pred_check_branch
          %267 = sbr.rel (%p265) target = $region32
        $region31: #{tpu_custom_call.1} parent=11 // pred_region
          _
        $region32: #{tpu_custom_call.1} parent=11 // pred_fallthru
          _
        // Predicated region
        $region33: #{tpu_custom_call.1} parent=11 // pred_check
          %p268 = pneg %p170
        $region34: #{tpu_custom_call.1} parent=11 // pred_check_branch
          %270 = sbr.rel (%p268) target = $region36
        $region35: #{tpu_custom_call.1} parent=11 // pred_region
          _
        $region36: #{tpu_custom_call.1} parent=11 // pred_fallthru
          _
        // Predicated region
        $region37: #{tpu_custom_call.1} parent=11 // pred_check
          %p271 = pneg %p191
        $region38: #{tpu_custom_call.1} parent=11 // pred_check_branch
          %273 = sbr.rel (%p271) target = $region40
        $region39: #{tpu_custom_call.1} parent=11 // pred_region
          _
        $region40: #{tpu_custom_call.1} parent=11 // pred_fallthru
          _
        // Predicated region
        $region41: #{tpu_custom_call.1} parent=11 // pred_check
          %p274 = pneg %p212
        $region42: #{tpu_custom_call.1} parent=11 // pred_check_branch
          %276 = sbr.rel (%p274) target = $region44
        $region43: #{tpu_custom_call.1} parent=11 // pred_region
          _
        $region44: #{tpu_custom_call.1} parent=11 // pred_fallthru
          _
      $region12: #{tpu_custom_call.1} parent=5 // pred_fallthru
        _
      %p277 = scmp.lt.s32.totalorder %s18, 2
      // Predicated region
      $region45: #{tpu_custom_call.1} parent=5 // pred_check
        %p278 = pneg %p277
      $region46: #{tpu_custom_call.1} parent=5 // pred_check_branch
        %280 = sbr.rel (%p278) target = $region48
      $region47: #{tpu_custom_call.1} parent=5 // pred_region
        // Predicated region
        $region49: #{tpu_custom_call.1} parent=47 // pred_check
          %p281 = pneg %p38
        $region50: #{tpu_custom_call.1} parent=47 // pred_check_branch
          %283 = sbr.rel (%p281) target = $region52
        $region51: #{tpu_custom_call.1} parent=47 // pred_region
          %p284 = scmp.lt.s32.totalorder %s18, 1
          %s285 = scalar_select %p284, %s18, 1
          %s286 = smul.addr %s285, 4
          %s287 = smul.addr %s286, 8
          %s288 = scalar_lea.vmem %s0, %s287
        $region52: #{tpu_custom_call.1} parent=47 // pred_fallthru
          _
      $region48: #{tpu_custom_call.1} parent=5 // pred_fallthru
        _
      %p289 = scmp.le.s32.totalorder 1, %s18
      %p290 = scmp.lt.s32.totalorder %s18, 3
      %p291 = pnand %p289, %p290
      %p292 = pneg %p291
      // Predicated region
      $region53: #{tpu_custom_call.1} parent=5 // pred_check
        _
      $region54: #{tpu_custom_call.1} parent=5 // pred_check_branch
        %294 = sbr.rel (%p291) target = $region56
      $region55: #{tpu_custom_call.1} parent=5 // pred_region
        %s295 = ssub.s32 %s18, 1
        %p296 = scmp.lt.s32.totalorder %s23, 1
        %s297 = scalar_select %p296, %s23, 1
        %s298 = smul.addr %s297, 4
        %s299 = smul.addr %s298, 8
        %s300 = scalar_lea.vmem %s0, %s299
        %p301 = pneg %p44
        %p302 = pneg %p41
        %p303 = pneg %p65
        %p304 = pneg %p62
        %p305 = pneg %p86
        %p306 = pneg %p83
        %p307 = pneg %p107
        %p308 = pneg %p104
        %p309 = pneg %p128
        %p310 = pneg %p125
        %p311 = pneg %p149
        %p312 = pneg %p146
        %p313 = pneg %p170
        %p314 = pneg %p167
        %p315 = pneg %p191
        %p316 = pneg %p188
        %p317 = pneg %p212
        %p318 = pneg %p209
        %p319 = pneg %p238
        %p320 = pneg %p235
        %s321 = sand.u32 %s225, 1
        %s322 = scalar_lea.sflag [#allocation3], %s321
        %s323 = sand.u32 %s225, 1
        %s324 = smul.addr %s323, 32
        %s325 = scalar_lea.vmem [#allocation2], %s324
        %p326 = scmp.lt.s32.totalorder %s23, 1
        %s327 = scalar_select %p326, %s23, 1
        %s328 = smul.addr %s327, 4
        %s329 = smul.addr %s328, 8
        %s330 = scalar_lea.vmem %s0, %s329
        %v331 = vld [vmem:[%s330] sm:$0xff]
        %v332 = vld [vmem:[%s330 + $0x8] sm:$0xff]
        %v333 = vld [vmem:[%s330 + $0x10] sm:$0xff]
        %v334 = vld [vmem:[%s330 + $0x18] sm:$0xff]
        %v335 = vld [vmem:[%s1] sm:$0xff]
        %v336 = vld [vmem:[%s1 + $0x8] sm:$0xff]
        %v337 = vld [vmem:[%s1 + $0x10] sm:$0xff]
        %v338 = vld [vmem:[%s1 + $0x18] sm:$0xff]
        %340 = vset.pattern.permute.xlu0 0
        %341 = vperm.xlu0 %340, %v335
        %v342 = vpop.permute.xlu0 %341
        %345 = vset.pattern.permute.xlu0 0
        %346 = vperm.xlu0 %345, %v336
        %v347 = vpop.permute.xlu0 %346
        %v349 = vmul.f32 %v331, %v342
        %v350 = vmul.f32 %v332, %v342
        %v351 = vmul.f32 %v333, %v347
        %v352 = vmul.f32 %v334, %v347
        %353 = vset.pattern.permute.xlu0 1
        %354 = vperm.xlu0 %353, %v335
        %v355 = vpop.permute.xlu0 %354
        %357 = vset.pattern.permute.xlu0 1
        %358 = vperm.xlu0 %357, %v336
        %v359 = vpop.permute.xlu0 %358
        %v361 = vadd.f32 %v349, %v355
        %v362 = vadd.f32 %v350, %v355
        %v363 = vadd.f32 %v351, %v359
        %v364 = vadd.f32 %v352, %v359
        %v365 = vmax.f32 %v361, 0.0
        %v366 = vmax.f32 %v362, 0.0
        %v367 = vmax.f32 %v363, 0.0
        %v368 = vmax.f32 %v364, 0.0
        %v369 = vld [vmem:[%s2] sm:$0xff]
        %v370 = vld [vmem:[%s2 + $0x8] sm:$0xff]
        %v371 = vld [vmem:[%s2 + $0x10] sm:$0xff]
        %v372 = vld [vmem:[%s2 + $0x18] sm:$0xff]
        %373 = vset.pattern.permute.xlu0 2
        %374 = vperm.xlu0 %373, %v335
        %v375 = vpop.permute.xlu0 %374
        %377 = vset.pattern.permute.xlu0 2
        %378 = vperm.xlu0 %377, %v336
        %v379 = vpop.permute.xlu0 %378
        %382 = vset.pattern.permute.xlu0 2
        %383 = vperm.xlu0 %382, %v337
        %v384 = vpop.permute.xlu0 %383
        %387 = vset.pattern.permute.xlu0 2
        %388 = vperm.xlu0 %387, %v338
        %v389 = vpop.permute.xlu0 %388
        %vm391 = vcmask 130048
        %v393 = vsel %vm391, %v369, 0
        %v396 = vsel %vm391, %v370, 0
        %v399 = vsel %vm391, %v371, 0
        %v402 = vsel %vm391, %v372, 0
        %404 = vmatprep.subr.mxu0 %v366
        %405 = vmatpush1.msra.mxu0 %v365
        %406 = vmatprep.subr.mxu0 %v368
        %407 = vmatpush1.msra.mxu0 %v367
        %408 = vmatprep.subr.mxu0 0.0
        %409 = vmatpush1.msra.mxu0 0.0
        %410 = vmatprep.subr.mxu0 0.0
        %411 = vmatpush1.msra.mxu0 0.0
        %412 = vmatprep.subr.mxu0 0.0
        %413 = vmatpush1.msra.mxu0 0.0
        %414 = vmatprep.subr.mxu0 0.0
        %415 = vmatpush1.msra.mxu0 0.0
        %416 = vmatprep.subr.mxu0 0.0
        %417 = vmatpush1.msra.mxu0 0.0
        %418 = vmatprep.subr.mxu0 0.0
        %419 = vmatpush1.msra.mxu0 0.0
        %420 = vmatprep.subr.mxu0 0.0
        %421 = vmatpush1.msra.mxu0 0.0
        %422 = vmatprep.subr.mxu0 0.0
        %423 = vmatpush1.msra.mxu0 0.0
        %424 = vmatprep.subr.mxu0 0.0
        %425 = vmatpush1.msra.mxu0 0.0
        %426 = vmatprep.subr.mxu0 0.0
        %427 = vmatpush1.msra.mxu0 0.0
        %428 = vmatprep.subr.mxu0 0.0
        %429 = vmatpush1.msra.mxu0 0.0
        %430 = vmatprep.subr.mxu0 0.0
        %431 = vmatpush1.msra.mxu0 0.0
        %432 = vmatprep.subr.mxu0 0.0
        %433 = vmatpush1.msra.mxu0 0.0
        %434 = vmatprep.subr.mxu0 0.0
        %435 = vmatpush1.msra.mxu0 0.0
        %436 = vmatprep.subr.mxu0 0.0
        %437 = vmatpush1.msra.mxu0 0.0
        %438 = vmatprep.subr.mxu0 0.0
        %439 = vmatpush1.msra.mxu0 0.0
        %440 = vmatprep.subr.mxu0 0.0
        %441 = vmatpush1.msra.mxu0 0.0
        %442 = vmatprep.subr.mxu0 0.0
        %443 = vmatpush1.msra.mxu0 0.0
        %444 = vmatprep.subr.mxu0 0.0
        %445 = vmatpush1.msra.mxu0 0.0
        %446 = vmatprep.subr.mxu0 0.0
        %447 = vmatpush1.msra.mxu0 0.0
        %448 = vmatprep.subr.mxu0 0.0
        %449 = vmatpush1.msra.mxu0 0.0
        %450 = vmatprep.subr.mxu0 0.0
        %451 = vmatpush1.msra.mxu0 0.0
        %452 = vmatprep.subr.mxu0 0.0
        %453 = vmatpush1.msra.mxu0 0.0
        %454 = vmatprep.subr.mxu0 0.0
        %455 = vmatpush1.msra.mxu0 0.0
        %456 = vmatprep.subr.mxu0 0.0
        %457 = vmatpush1.msra.mxu0 0.0
        %458 = vmatprep.subr.mxu0 0.0
        %459 = vmatpush1.msra.mxu0 0.0
        %460 = vmatprep.subr.mxu0 0.0
        %461 = vmatpush1.msra.mxu0 0.0
        %462 = vmatprep.subr.mxu0 0.0
        %463 = vmatpush1.msra.mxu0 0.0
        %464 = vmatprep.subr.mxu0 0.0
        %465 = vmatpush1.msra.mxu0 0.0
        %466 = vmatprep.subr.mxu0 0.0
        %467 = vmatpush1.msra.mxu0 0.0
        %468 = vmatprep.mubr.f32.mxu0 0.0
        %469 = vmatmul.mubr.f32.gmra.mrb[0].mxu0 %v393
        %v470 = vpop.f32.mrb[0].mxu0
        %v471 = vadd.f32 %v375, %v470
        %v472 = vpop.f32.mrb[0].mxu0
        %v473 = vadd.f32 %v375, %v472
        %474 = vmatprep.mubr.f32.mxu0 0.0
        %475 = vmatmul.mubr.f32.gmra.mrb[0].mxu0 %v396
        %v476 = vpop.f32.mrb[0].mxu0
        %v477 = vadd.f32 %v379, %v476
        %v478 = vpop.f32.mrb[0].mxu0
        %v479 = vadd.f32 %v379, %v478
        %480 = vmatprep.mubr.f32.mxu0 0.0
        %481 = vmatmul.mubr.f32.gmra.mrb[0].mxu0 %v399
        %v482 = vpop.f32.mrb[0].mxu0
        %v483 = vadd.f32 %v384, %v482
        %v484 = vpop.f32.mrb[0].mxu0
        %v485 = vadd.f32 %v384, %v484
        %486 = vmatprep.mubr.f32.mxu0 0.0
        %487 = vmatmul.mubr.f32.gmra.mrb[0].mxu0 %v402
        %v488 = vpop.f32.mrb[0].mxu0
        %v489 = vadd.f32 %v389, %v488
        %v490 = vpop.f32.mrb[0].mxu0
        %v491 = vadd.f32 %v389, %v490
        %492 = vdwg.mxu0
        %v493 = vmax.f32 %v471, 0.0
        %v494 = vmax.f32 %v473, 0.0
        %v495 = vmax.f32 %v477, 0.0
        %v496 = vmax.f32 %v479, 0.0
        %v497 = vmax.f32 %v483, 0.0
        %v498 = vmax.f32 %v485, 0.0
        %v499 = vmax.f32 %v489, 0.0
        %v500 = vmax.f32 %v491, 0.0
        %501 = vrot.lane.b32.xlu0 %v493, 2
        %v502 = vpop.permute.xlu0 %501
        %503 = vrot.lane.b32.xlu0 %v495, 2
        %v504 = vpop.permute.xlu0 %503
        %505 = vrot.lane.b32.xlu0 %v497, 2
        %v506 = vpop.permute.xlu0 %505
        %507 = vrot.lane.b32.xlu0 %v499, 2
        %v508 = vpop.permute.xlu0 %507
        %509 = vrot.lane.b32.xlu0 %v494, 2
        %v510 = vpop.permute.xlu0 %509
        %511 = vrot.lane.b32.xlu0 %v496, 2
        %v512 = vpop.permute.xlu0 %511
        %513 = vrot.lane.b32.xlu0 %v498, 2
        %v514 = vpop.permute.xlu0 %513
        %515 = vrot.lane.b32.xlu0 %v500, 2
        %v516 = vpop.permute.xlu0 %515
        %v517 = vlaneseq
        %v518 = vand.u32 %v517, 127
        %vm519 = vcmp.lt.s32.totalorder %v518, 2
        %v520 = vsel %vm519, %v502, %v510
        %v521 = vsel %vm519, %v504, %v512
        %v522 = vsel %vm519, %v506, %v514
        %v523 = vsel %vm519, %v508, %v516
        %v524 = vsel %vm519, %v510, %v502
        %v525 = vsel %vm519, %v512, %v504
        %v526 = vsel %vm519, %v514, %v506
        %v527 = vsel %vm519, %v516, %v508
        %v528 = vld [vmem:[%s8] ss:$4 sm:$0x3]
        %v530 = vlaneseq
        %v531 = vshrl.u32 %v530, 7
        %v532 = vsub.s32 0, %v531
        %v533 = vrot.slane %v528, %v532
        %v534 = vlaneseq
        %v535 = vshrl.u32 %v534, 7
        %v536 = vsub.s32 1, %v535
        %v537 = vrot.slane %v528, %v536
        %v540 = vmul.f32 %v524, %v533
        %v541 = vmul.f32 %v520, %v537
        %v542 = vmul.f32 %v525, %v533
        %v543 = vmul.f32 %v521, %v537
        %v544 = vmul.f32 %v526, %v533
        %v545 = vmul.f32 %v522, %v537
        %v546 = vmul.f32 %v527, %v533
        %v547 = vmul.f32 %v523, %v537
        %548 = vrot.lane.b32.xlu0 %v493, 126
        %v549 = vpop.permute.xlu0 %548
        %550 = vrot.lane.b32.xlu0 %v495, 126
        %v551 = vpop.permute.xlu0 %550
        %552 = vrot.lane.b32.xlu0 %v497, 126
        %v553 = vpop.permute.xlu0 %552
        %554 = vrot.lane.b32.xlu0 %v499, 126
        %v555 = vpop.permute.xlu0 %554
        %556 = vrot.lane.b32.xlu0 %v494, 126
        %v557 = vpop.permute.xlu0 %556
        %558 = vrot.lane.b32.xlu0 %v496, 126
        %v559 = vpop.permute.xlu0 %558
        %560 = vrot.lane.b32.xlu0 %v498, 126
        %v561 = vpop.permute.xlu0 %560
        %562 = vrot.lane.b32.xlu0 %v500, 126
        %v563 = vpop.permute.xlu0 %562
        %vm564 = vcmp.lt.s32.totalorder %v518, 126
        %v565 = vsel %vm564, %v549, %v557
        %v566 = vsel %vm564, %v551, %v559
        %v567 = vsel %vm564, %v553, %v561
        %v568 = vsel %vm564, %v555, %v563
        %v569 = vsel %vm564, %v557, %v549
        %v570 = vsel %vm564, %v559, %v551
        %v571 = vsel %vm564, %v561, %v553
        %v572 = vsel %vm564, %v563, %v555
        %s573 = scalar_lea.vmem %s8, 2
        %v574 = vld [vmem:[%s573] ss:$4 sm:$0x3]
        %v576 = vlaneseq
        %v577 = vshrl.u32 %v576, 7
        %v578 = vsub.s32 0, %v577
        %v579 = vrot.slane %v574, %v578
        %v580 = vlaneseq
        %v581 = vshrl.u32 %v580, 7
        %v582 = vsub.s32 1, %v581
        %v583 = vrot.slane %v574, %v582
        %v586 = vmul.f32 %v565, %v579
        %v587 = vmul.f32 %v569, %v583
        %v588 = vmul.f32 %v566, %v579
        %v589 = vmul.f32 %v570, %v583
        %v590 = vmul.f32 %v567, %v579
        %v591 = vmul.f32 %v571, %v583
        %v592 = vmul.f32 %v568, %v579
        %v593 = vmul.f32 %v572, %v583
        %v594 = vld [vmem:[%s3] sm:$0xff]
        %v595 = vld [vmem:[%s3 + $0x8] sm:$0xff]
        %vm596 = vcmask 785408
        %v598 = vsel %vm596, %v594, 0
        %v601 = vsel %vm596, %v595, 0
        %603 = vmatprep.subr.mxu0 %v541
        %604 = vmatpush1.msra.mxu0 %v540
        %605 = vmatprep.subr.mxu0 %v543
        %606 = vmatpush1.msra.mxu0 %v542
        %607 = vmatprep.subr.mxu0 %v545
        %608 = vmatpush1.msra.mxu0 %v544
        %609 = vmatprep.subr.mxu0 %v547
        %610 = vmatpush1.msra.mxu0 %v546
        %611 = vmatprep.subr.mxu0 %v494
        %612 = vmatpush1.msra.mxu0 %v493
        %613 = vmatprep.subr.mxu0 %v496
        %614 = vmatpush1.msra.mxu0 %v495
        %615 = vmatprep.subr.mxu0 %v498
        %616 = vmatpush1.msra.mxu0 %v497
        %617 = vmatprep.subr.mxu0 %v500
        %618 = vmatpush1.msra.mxu0 %v499
        %619 = vmatprep.subr.mxu0 %v587
        %620 = vmatpush1.msra.mxu0 %v586
        %621 = vmatprep.subr.mxu0 %v589
        %622 = vmatpush1.msra.mxu0 %v588
        %623 = vmatprep.subr.mxu0 %v591
        %624 = vmatpush1.msra.mxu0 %v590
        %625 = vmatprep.subr.mxu0 %v593
        %626 = vmatpush1.msra.mxu0 %v592
        %627 = vmatprep.subr.mxu0 0.0
        %628 = vmatpush1.msra.mxu0 0.0
        %629 = vmatprep.subr.mxu0 0.0
        %630 = vmatpush1.msra.mxu0 0.0
        %631 = vmatprep.subr.mxu0 0.0
        %632 = vmatpush1.msra.mxu0 0.0
        %633 = vmatprep.subr.mxu0 0.0
        %634 = vmatpush1.msra.mxu0 0.0
        %635 = vmatprep.subr.mxu0 0.0
        %636 = vmatpush1.msra.mxu0 0.0
        %637 = vmatprep.subr.mxu0 0.0
        %638 = vmatpush1.msra.mxu0 0.0
        %639 = vmatprep.subr.mxu0 0.0
        %640 = vmatpush1.msra.mxu0 0.0
        %641 = vmatprep.subr.mxu0 0.0
        %642 = vmatpush1.msra.mxu0 0.0
        %643 = vmatprep.subr.mxu0 0.0
        %644 = vmatpush1.msra.mxu0 0.0
        %645 = vmatprep.subr.mxu0 0.0
        %646 = vmatpush1.msra.mxu0 0.0
        %647 = vmatprep.subr.mxu0 0.0
        %648 = vmatpush1.msra.mxu0 0.0
        %649 = vmatprep.subr.mxu0 0.0
        %650 = vmatpush1.msra.mxu0 0.0
        %651 = vmatprep.subr.mxu0 0.0
        %652 = vmatpush1.msra.mxu0 0.0
        %653 = vmatprep.subr.mxu0 0.0
        %654 = vmatpush1.msra.mxu0 0.0
        %655 = vmatprep.subr.mxu0 0.0
        %656 = vmatpush1.msra.mxu0 0.0
        %657 = vmatprep.subr.mxu0 0.0
        %658 = vmatpush1.msra.mxu0 0.0
        %659 = vmatprep.subr.mxu0 0.0
        %660 = vmatpush1.msra.mxu0 0.0
        %661 = vmatprep.subr.mxu0 0.0
        %662 = vmatpush1.msra.mxu0 0.0
        %663 = vmatprep.subr.mxu0 0.0
        %664 = vmatpush1.msra.mxu0 0.0
        %665 = vmatprep.subr.mxu0 0.0
        %666 = vmatpush1.msra.mxu0 0.0
        %667 = vmatprep.mubr.f32.mxu0 0.0
        %668 = vmatmul.mubr.f32.gmra.mrb[0].mxu0 %v598
        %v669 = vpop.f32.mrb[0].mxu0
        %v670 = vadd.f32 0.0, %v669
        %v671 = vpop.f32.mrb[0].mxu0
        %v672 = vadd.f32 0.0, %v671
        %673 = vmatprep.mubr.f32.mxu0 0.0
        %674 = vmatmul.mubr.f32.gmra.mrb[0].mxu0 %v601
        %v675 = vpop.f32.mrb[0].mxu0
        %v676 = vadd.f32 0.0, %v675
        %v677 = vpop.f32.mrb[0].mxu0
        %v678 = vadd.f32 0.0, %v677
        %679 = vdwg.mxu0
        %v680 = vld [vmem:[%s6] sm:$0xff]
        %v681 = vld [vmem:[%s6 + $0x8] sm:$0xff]
        %v682 = vld [vmem:[%s6 + $0x10] sm:$0xff]
        %v683 = vld [vmem:[%s6 + $0x18] sm:$0xff]
        %v684 = vld [vmem:[%s6 + $0x20] sm:$0xff]
        %v685 = vld [vmem:[%s6 + $0x28] sm:$0xff]
        %v686 = vld [vmem:[%s6 + $0x30] sm:$0xff]
        %v687 = vld [vmem:[%s6 + $0x38] sm:$0xff]
        %v688 = vld [vmem:[%s6 + $0x40] sm:$0xff]
        %v689 = vld [vmem:[%s6 + $0x48] sm:$0xff]
        %v690 = vld [vmem:[%s6 + $0x50] sm:$0xff]
        %v691 = vld [vmem:[%s6 + $0x58] sm:$0xff]
        %v692 = vld [vmem:[%s6 + $0x60] sm:$0xff]
        %v693 = vld [vmem:[%s6 + $0x68] sm:$0xff]
        %v694 = vld [vmem:[%s6 + $0x70] sm:$0xff]
        %v695 = vld [vmem:[%s6 + $0x78] sm:$0xff]
        %v696 = vld [vmem:[%s6 + $0x80] sm:$0xff]
        %v697 = vld [vmem:[%s6 + $0x88] sm:$0xff]
        %v698 = vld [vmem:[%s6 + $0x90] sm:$0xff]
        %v699 = vld [vmem:[%s6 + $0x98] sm:$0xff]
        %v700 = vld [vmem:[%s6 + $0xa0] sm:$0xff]
        %v701 = vld [vmem:[%s6 + $0xa8] sm:$0xff]
        %v702 = vld [vmem:[%s6 + $0xb0] sm:$0xff]
        %v703 = vld [vmem:[%s6 + $0xb8] sm:$0xff]
        %v704 = vld [vmem:[%s6 + $0xc0] sm:$0xff]
        %v705 = vld [vmem:[%s6 + $0xc8] sm:$0xff]
        %v706 = vld [vmem:[%s6 + $0xd0] sm:$0xff]
        %v707 = vld [vmem:[%s6 + $0xd8] sm:$0xff]
        %v708 = vld [vmem:[%s6 + $0xe0] sm:$0xff]
        %v709 = vld [vmem:[%s6 + $0xe8] sm:$0xff]
        %v710 = vld [vmem:[%s6 + $0xf0] sm:$0xff]
        %v711 = vld [vmem:[%s6 + $0xf8] sm:$0xff]
        %712 = vmatprep.subr.mxu0 0.0
        %713 = vmatpush1.msra.mxu0 %v680
        %714 = vmatprep.subr.mxu0 0.0
        %715 = vmatpush1.msra.mxu0 %v681
        %716 = vmatprep.subr.mxu0 0.0
        %717 = vmatpush1.msra.mxu0 %v682
        %718 = vmatprep.subr.mxu0 0.0
        %719 = vmatpush1.msra.mxu0 %v683
        %720 = vmatprep.subr.mxu0 0.0
        %721 = vmatpush1.msra.mxu0 %v684
        %722 = vmatprep.subr.mxu0 0.0
        %723 = vmatpush1.msra.mxu0 %v685
        %724 = vmatprep.subr.mxu0 0.0
        %725 = vmatpush1.msra.mxu0 %v686
        %726 = vmatprep.subr.mxu0 0.0
        %727 = vmatpush1.msra.mxu0 %v687
        %728 = vmatprep.subr.mxu0 0.0
        %729 = vmatpush1.msra.mxu0 %v688
        %730 = vmatprep.subr.mxu0 0.0
        %731 = vmatpush1.msra.mxu0 %v689
        %732 = vmatprep.subr.mxu0 0.0
        %733 = vmatpush1.msra.mxu0 %v690
        %734 = vmatprep.subr.mxu0 0.0
        %735 = vmatpush1.msra.mxu0 %v691
        %736 = vmatprep.subr.mxu0 0.0
        %737 = vmatpush1.msra.mxu0 %v692
        %738 = vmatprep.subr.mxu0 0.0
        %739 = vmatpush1.msra.mxu0 %v693
        %740 = vmatprep.subr.mxu0 0.0
        %741 = vmatpush1.msra.mxu0 %v694
        %742 = vmatprep.subr.mxu0 0.0
        %743 = vmatpush1.msra.mxu0 %v695
        %744 = vmatprep.subr.mxu0 0.0
        %745 = vmatpush1.msra.mxu0 %v696
        %746 = vmatprep.subr.mxu0 0.0
        %747 = vmatpush1.msra.mxu0 %v697
        %748 = vmatprep.subr.mxu0 0.0
        %749 = vmatpush1.msra.mxu0 %v698
        %750 = vmatprep.subr.mxu0 0.0
        %751 = vmatpush1.msra.mxu0 %v699
        %752 = vmatprep.subr.mxu0 0.0
        %753 = vmatpush1.msra.mxu0 %v700
        %754 = vmatprep.subr.mxu0 0.0
        %755 = vmatpush1.msra.mxu0 %v701
        %756 = vmatprep.subr.mxu0 0.0
        %757 = vmatpush1.msra.mxu0 %v702
        %758 = vmatprep.subr.mxu0 0.0
        %759 = vmatpush1.msra.mxu0 %v703
        %760 = vmatprep.subr.mxu0 0.0
        %761 = vmatpush1.msra.mxu0 %v704
        %762 = vmatprep.subr.mxu0 0.0
        %763 = vmatpush1.msra.mxu0 %v705
        %764 = vmatprep.subr.mxu0 0.0
        %765 = vmatpush1.msra.mxu0 %v706
        %766 = vmatprep.subr.mxu0 0.0
        %767 = vmatpush1.msra.mxu0 %v707
        %768 = vmatprep.subr.mxu0 0.0
        %769 = vmatpush1.msra.mxu0 %v708
        %770 = vmatprep.subr.mxu0 0.0
        %771 = vmatpush1.msra.mxu0 %v709
        %772 = vmatprep.subr.mxu0 0.0
        %773 = vmatpush1.msra.mxu0 %v710
        %774 = vmatprep.subr.mxu0 0.0
        %775 = vmatpush1.msra.mxu0 %v711
        %776 = vmatprep.mubr.f32.mxu0 %v494
        %777 = vmatmul.mubr.f32.gmra.mrb[0].mxu0 %v493
        %v778 = vpop.f32.mrb[0].mxu0
        %v779 = vadd.f32 0.0, %v778
        %v780 = vpop.f32.mrb[0].mxu0
        %781 = vmatprep.mubr.f32.mxu0 %v496
        %782 = vmatmul.mubr.f32.gmra.mrb[0].mxu0 %v495
        %v783 = vpop.f32.mrb[0].mxu0
        %v784 = vadd.f32 0.0, %v783
        %v785 = vpop.f32.mrb[0].mxu0
        %786 = vmatprep.mubr.f32.mxu0 %v498
        %787 = vmatmul.mubr.f32.gmra.mrb[0].mxu0 %v497
        %v788 = vpop.f32.mrb[0].mxu0
        %v789 = vadd.f32 0.0, %v788
        %v790 = vpop.f32.mrb[0].mxu0
        %791 = vmatprep.mubr.f32.mxu0 %v500
        %792 = vmatmul.mubr.f32.gmra.mrb[0].mxu0 %v499
        %v793 = vpop.f32.mrb[0].mxu0
        %v794 = vadd.f32 0.0, %v793
        %v795 = vpop.f32.mrb[0].mxu0
        %796 = vdwg.mxu0
        %v797 = vld [vmem:[%s4] sm:$0xff]
        %v798 = vld [vmem:[%s4 + $0x8] sm:$0xff]
        %799 = vset.pattern.permute.xlu0 3
        %800 = vperm.xlu0 %799, %v335
        %v801 = vpop.permute.xlu0 %800
        %803 = vset.pattern.permute.xlu0 3
        %804 = vperm.xlu0 %803, %v336
        %v805 = vpop.permute.xlu0 %804
        %vm807 = vcmask 261120
        %v809 = vsel %vm807, %v797, 0
        %v812 = vsel %vm807, %v798, 0
        %814 = vmatprep.subr.mxu0 0.0
        %815 = vmatpush1.msra.mxu0 %v779
        %816 = vmatprep.subr.mxu0 0.0
        %817 = vmatpush1.msra.mxu0 %v784
        %818 = vmatprep.subr.mxu0 0.0
        %819 = vmatpush1.msra.mxu0 %v789
        %820 = vmatprep.subr.mxu0 0.0
        %821 = vmatpush1.msra.mxu0 %v794
        %822 = vmatprep.subr.mxu0 0.0
        %823 = vmatpush1.msra.mxu0 0.0
        %824 = vmatprep.subr.mxu0 0.0
        %825 = vmatpush1.msra.mxu0 0.0
        %826 = vmatprep.subr.mxu0 0.0
        %827 = vmatpush1.msra.mxu0 0.0
        %828 = vmatprep.subr.mxu0 0.0
        %829 = vmatpush1.msra.mxu0 0.0
        %830 = vmatprep.subr.mxu0 0.0
        %831 = vmatpush1.msra.mxu0 0.0
        %832 = vmatprep.subr.mxu0 0.0
        %833 = vmatpush1.msra.mxu0 0.0
        %834 = vmatprep.subr.mxu0 0.0
        %835 = vmatpush1.msra.mxu0 0.0
        %836 = vmatprep.subr.mxu0 0.0
        %837 = vmatpush1.msra.mxu0 0.0
        %838 = vmatprep.subr.mxu0 0.0
        %839 = vmatpush1.msra.mxu0 0.0
        %840 = vmatprep.subr.mxu0 0.0
        %841 = vmatpush1.msra.mxu0 0.0
        %842 = vmatprep.subr.mxu0 0.0
        %843 = vmatpush1.msra.mxu0 0.0
        %844 = vmatprep.subr.mxu0 0.0
        %845 = vmatpush1.msra.mxu0 0.0
        %846 = vmatprep.subr.mxu0 0.0
        %847 = vmatpush1.msra.mxu0 0.0
        %848 = vmatprep.subr.mxu0 0.0
        %849 = vmatpush1.msra.mxu0 0.0
        %850 = vmatprep.subr.mxu0 0.0
        %851 = vmatpush1.msra.mxu0 0.0
        %852 = vmatprep.subr.mxu0 0.0
        %853 = vmatpush1.msra.mxu0 0.0
        %854 = vmatprep.subr.mxu0 0.0
        %855 = vmatpush1.msra.mxu0 0.0
        %856 = vmatprep.subr.mxu0 0.0
        %857 = vmatpush1.msra.mxu0 0.0
        %858 = vmatprep.subr.mxu0 0.0
        %859 = vmatpush1.msra.mxu0 0.0
        %860 = vmatprep.subr.mxu0 0.0
        %861 = vmatpush1.msra.mxu0 0.0
        %862 = vmatprep.subr.mxu0 0.0
        %863 = vmatpush1.msra.mxu0 0.0
        %864 = vmatprep.subr.mxu0 0.0
        %865 = vmatpush1.msra.mxu0 0.0
        %866 = vmatprep.subr.mxu0 0.0
        %867 = vmatpush1.msra.mxu0 0.0
        %868 = vmatprep.subr.mxu0 0.0
        %869 = vmatpush1.msra.mxu0 0.0
        %870 = vmatprep.subr.mxu0 0.0
        %871 = vmatpush1.msra.mxu0 0.0
        %872 = vmatprep.subr.mxu0 0.0
        %873 = vmatpush1.msra.mxu0 0.0
        %874 = vmatprep.subr.mxu0 0.0
        %875 = vmatpush1.msra.mxu0 0.0
        %876 = vmatprep.subr.mxu0 0.0
        %877 = vmatpush1.msra.mxu0 0.0
        %878 = vmatprep.mubr.f32.mxu0 0.0
        %879 = vmatmul.mubr.f32.gmra.mrb[0].mxu0 %v809
        %v880 = vpop.f32.mrb[0].mxu0
        %v881 = vadd.f32 %v801, %v880
        %v882 = vpop.f32.mrb[0].mxu0
        %883 = vmatprep.mubr.f32.mxu0 0.0
        %884 = vmatmul.mubr.f32.gmra.mrb[0].mxu0 %v812
        %v885 = vpop.f32.mrb[0].mxu0
        %v886 = vadd.f32 %v805, %v885
        %v887 = vpop.f32.mrb[0].mxu0
        %888 = vdwg.mxu0
        %v889 = vmax.f32 %v881, 0.0
        %v890 = vmax.f32 %v886, 0.0
        %v891 = vld [vmem:[%s5] sm:$0xff]
        %v892 = vld [vmem:[%s5 + $0x8] sm:$0xff]
        %893 = vset.pattern.permute.xlu0 4
        %894 = vperm.xlu0 %893, %v335
        %v895 = vpop.permute.xlu0 %894
        %897 = vset.pattern.permute.xlu0 4
        %898 = vperm.xlu0 %897, %v336
        %v899 = vpop.permute.xlu0 %898
        %v902 = vsel %vm391, %v891, 0
        %v905 = vsel %vm391, %v892, 0
        %907 = vmatprep.subr.mxu0 0.0
        %908 = vmatpush1.msra.mxu0 %v889
        %909 = vmatprep.subr.mxu0 0.0
        %910 = vmatpush1.msra.mxu0 %v890
        %911 = vmatprep.subr.mxu0 0.0
        %912 = vmatpush1.msra.mxu0 0.0
        %913 = vmatprep.subr.mxu0 0.0
        %914 = vmatpush1.msra.mxu0 0.0
        %915 = vmatprep.subr.mxu0 0.0
        %916 = vmatpush1.msra.mxu0 0.0
        %917 = vmatprep.subr.mxu0 0.0
        %918 = vmatpush1.msra.mxu0 0.0
        %919 = vmatprep.subr.mxu0 0.0
        %920 = vmatpush1.msra.mxu0 0.0
        %921 = vmatprep.subr.mxu0 0.0
        %922 = vmatpush1.msra.mxu0 0.0
        %923 = vmatprep.subr.mxu0 0.0
        %924 = vmatpush1.msra.mxu0 0.0
        %925 = vmatprep.subr.mxu0 0.0
        %926 = vmatpush1.msra.mxu0 0.0
        %927 = vmatprep.subr.mxu0 0.0
        %928 = vmatpush1.msra.mxu0 0.0
        %929 = vmatprep.subr.mxu0 0.0
        %930 = vmatpush1.msra.mxu0 0.0
        %931 = vmatprep.subr.mxu0 0.0
        %932 = vmatpush1.msra.mxu0 0.0
        %933 = vmatprep.subr.mxu0 0.0
        %934 = vmatpush1.msra.mxu0 0.0
        %935 = vmatprep.subr.mxu0 0.0
        %936 = vmatpush1.msra.mxu0 0.0
        %937 = vmatprep.subr.mxu0 0.0
        %938 = vmatpush1.msra.mxu0 0.0
        %939 = vmatprep.subr.mxu0 0.0
        %940 = vmatpush1.msra.mxu0 0.0
        %941 = vmatprep.subr.mxu0 0.0
        %942 = vmatpush1.msra.mxu0 0.0
        %943 = vmatprep.subr.mxu0 0.0
        %944 = vmatpush1.msra.mxu0 0.0
        %945 = vmatprep.subr.mxu0 0.0
        %946 = vmatpush1.msra.mxu0 0.0
        %947 = vmatprep.subr.mxu0 0.0
        %948 = vmatpush1.msra.mxu0 0.0
        %949 = vmatprep.subr.mxu0 0.0
        %950 = vmatpush1.msra.mxu0 0.0
        %951 = vmatprep.subr.mxu0 0.0
        %952 = vmatpush1.msra.mxu0 0.0
        %953 = vmatprep.subr.mxu0 0.0
        %954 = vmatpush1.msra.mxu0 0.0
        %955 = vmatprep.subr.mxu0 0.0
        %956 = vmatpush1.msra.mxu0 0.0
        %957 = vmatprep.subr.mxu0 0.0
        %958 = vmatpush1.msra.mxu0 0.0
        %959 = vmatprep.subr.mxu0 0.0
        %960 = vmatpush1.msra.mxu0 0.0
        %961 = vmatprep.subr.mxu0 0.0
        %962 = vmatpush1.msra.mxu0 0.0
        %963 = vmatprep.subr.mxu0 0.0
        %964 = vmatpush1.msra.mxu0 0.0
        %965 = vmatprep.subr.mxu0 0.0
        %966 = vmatpush1.msra.mxu0 0.0
        %967 = vmatprep.subr.mxu0 0.0
        %968 = vmatpush1.msra.mxu0 0.0
        %969 = vmatprep.subr.mxu0 0.0
        %970 = vmatpush1.msra.mxu0 0.0
        %971 = vmatprep.mubr.f32.mxu0 0.0
        %972 = vmatmul.mubr.f32.gmra.mrb[0].mxu0 %v902
        %v973 = vpop.f32.mrb[0].mxu0
        %v974 = vadd.f32 %v895, %v973
        %v975 = vpop.f32.mrb[0].mxu0
        %976 = vmatprep.mubr.f32.mxu0 0.0
        %977 = vmatmul.mubr.f32.gmra.mrb[0].mxu0 %v905
        %v978 = vpop.f32.mrb[0].mxu0
        %v979 = vadd.f32 %v899, %v978
        %v980 = vpop.f32.mrb[0].mxu0
        %981 = vdwg.mxu0
        %v982 = vxor.u32 %v974, 2147483648
        %v983 = vxor.u32 %v979, 2147483648
        %v984 = vmul.f32 %v982, 1.442695
        %v985 = vpow.pop %v984
        %v986 = vmul.f32 %v983, 1.442695
        %v987 = vpow.pop %v986
        %v988 = vadd.f32 %v985, 1.0
        %v989 = vadd.f32 %v987, 1.0
        %v990 = vrcp.pop %v988
        %v991 = vmul.f32 1.0, %v990
        %v992 = vrcp.pop %v989
        %v993 = vmul.f32 1.0, %v992
        %v994 = vld [vmem:[%s7] sm:$0x77]
        %v996 = vcombine.high %v994, %v994
        %vm997 = vcmask 23552
        %v999 = vsel %vm997, %v991, 0
        %v1002 = vsel %vm997, %v993, 0
        %vm1004 = vcmask 1042432
        %v1005 = vsel %vm1004, %v994, 0
        %v1007 = vsel %vm1004, %v996, 0
        %1009 = vmatprep.subr.mxu0 %v1007
        %1010 = vmatpush1.msra.mxu0 %v1005
        %1011 = vmatprep.subr.mxu0 0.0
        %1012 = vmatpush1.msra.mxu0 0.0
        %1013 = vmatprep.subr.mxu0 0.0
        %1014 = vmatpush1.msra.mxu0 0.0
        %1015 = vmatprep.subr.mxu0 0.0
        %1016 = vmatpush1.msra.mxu0 0.0
        %1017 = vmatprep.subr.mxu0 0.0
        %1018 = vmatpush1.msra.mxu0 0.0
        %1019 = vmatprep.subr.mxu0 0.0
        %1020 = vmatpush1.msra.mxu0 0.0
        %1021 = vmatprep.subr.mxu0 0.0
        %1022 = vmatpush1.msra.mxu0 0.0
        %1023 = vmatprep.subr.mxu0 0.0
        %1024 = vmatpush1.msra.mxu0 0.0
        %1025 = vmatprep.subr.mxu0 0.0
        %1026 = vmatpush1.msra.mxu0 0.0
        %1027 = vmatprep.subr.mxu0 0.0
        %1028 = vmatpush1.msra.mxu0 0.0
        %1029 = vmatprep.subr.mxu0 0.0
        %1030 = vmatpush1.msra.mxu0 0.0
        %1031 = vmatprep.subr.mxu0 0.0
        %1032 = vmatpush1.msra.mxu0 0.0
        %1033 = vmatprep.subr.mxu0 0.0
        %1034 = vmatpush1.msra.mxu0 0.0
        %1035 = vmatprep.subr.mxu0 0.0
        %1036 = vmatpush1.msra.mxu0 0.0
        %1037 = vmatprep.subr.mxu0 0.0
        %1038 = vmatpush1.msra.mxu0 0.0
        %1039 = vmatprep.subr.mxu0 0.0
        %1040 = vmatpush1.msra.mxu0 0.0
        %1041 = vmatprep.subr.mxu0 0.0
        %1042 = vmatpush1.msra.mxu0 0.0
        %1043 = vmatprep.subr.mxu0 0.0
        %1044 = vmatpush1.msra.mxu0 0.0
        %1045 = vmatprep.subr.mxu0 0.0
        %1046 = vmatpush1.msra.mxu0 0.0
        %1047 = vmatprep.subr.mxu0 0.0
        %1048 = vmatpush1.msra.mxu0 0.0
        %1049 = vmatprep.subr.mxu0 0.0
        %1050 = vmatpush1.msra.mxu0 0.0
        %1051 = vmatprep.subr.mxu0 0.0
        %1052 = vmatpush1.msra.mxu0 0.0
        %1053 = vmatprep.subr.mxu0 0.0
        %1054 = vmatpush1.msra.mxu0 0.0
        %1055 = vmatprep.subr.mxu0 0.0
        %1056 = vmatpush1.msra.mxu0 0.0
        %1057 = vmatprep.subr.mxu0 0.0
        %1058 = vmatpush1.msra.mxu0 0.0
        %1059 = vmatprep.subr.mxu0 0.0
        %1060 = vmatpush1.msra.mxu0 0.0
        %1061 = vmatprep.subr.mxu0 0.0
        %1062 = vmatpush1.msra.mxu0 0.0
        %1063 = vmatprep.subr.mxu0 0.0
        %1064 = vmatpush1.msra.mxu0 0.0
        %1065 = vmatprep.subr.mxu0 0.0
        %1066 = vmatpush1.msra.mxu0 0.0
        %1067 = vmatprep.subr.mxu0 0.0
        %1068 = vmatpush1.msra.mxu0 0.0
        %1069 = vmatprep.subr.mxu0 0.0
        %1070 = vmatpush1.msra.mxu0 0.0
        %1071 = vmatprep.subr.mxu0 0.0
        %1072 = vmatpush1.msra.mxu0 0.0
        %1073 = vmatprep.mubr.f32.mxu0 0.0
        %1074 = vmatmul.mubr.f32.gmra.mrb[0].mxu0 %v999
        %v1075 = vpop.f32.mrb[0].mxu0
        %v1076 = vadd.f32 0.0, %v1075
        %v1077 = vpop.f32.mrb[0].mxu0
        %v1078 = vadd.f32 0.0, %v1077
        %1079 = vmatprep.mubr.f32.mxu0 0.0
        %1080 = vmatmul.mubr.f32.gmra.mrb[0].mxu0 %v1002
        %v1081 = vpop.f32.mrb[0].mxu0
        %v1082 = vadd.f32 0.0, %v1081
        %v1083 = vpop.f32.mrb[0].mxu0
        %v1084 = vadd.f32 0.0, %v1083
        %1085 = vdwg.mxu0
        %v1086 = vmul.f32 %v670, %v1076
        %v1087 = vmul.f32 %v672, %v1078
        %v1088 = vmul.f32 %v676, %v1082
        %v1089 = vmul.f32 %v678, %v1084
        %1090 = vst [vmem:[%s325] sm:$0xff] %v1086
        %1091 = vst [vmem:[%s325 + $0x8] sm:$0xff] %v1087
        %1092 = vst [vmem:[%s325 + $0x10] sm:$0xff] %v1088
        %1093 = vst [vmem:[%s325 + $0x18] sm:$0xff] %v1089
        %s1094 = sand.u32 %s225, 1
        %s1095 = scalar_lea.sflag [#allocation3], %s1094
        %s1096 = sand.u32 %s225, 1
        %s1097 = smul.addr %s1096, 32
        %s1098 = scalar_lea.vmem [#allocation2], %s1097
        // Predicated region
        $region57: #{tpu_custom_call.1} parent=55 // pred_check
          %p1099 = pneg %p235
        $region58: #{tpu_custom_call.1} parent=55 // pred_check_branch
          %1101 = sbr.rel (%p1099) target = $region60
        $region59: #{tpu_custom_call.1} parent=55 // pred_region
          %s1103 = ssub.s32 512, 512
          %1104 = vsyncadd %s1095, %s1103
          %s1105 = smul.addr %s23, 4
          %s1106 = smul.addr %s1105, 128
          %s1107 = scalar_lea.hbm %s9, %s1106
          %s1108 = sshll.u32 %s1098, 4
          %s1109 = int_to_ptr.vmem [resolvable:$true] %s1108
          %1114 = dma.vmem_to_hbm [thread:$0]  %s1109, 512, %s1107, %s1095, 256, 256, 16
        $region60: #{tpu_custom_call.1} parent=55 // pred_fallthru
          _
      $region56: #{tpu_custom_call.1} parent=5 // pred_fallthru
        _
      %p1115 = scmp.le.s32.totalorder 2, %s18
      // Predicated region
      $region61: #{tpu_custom_call.1} parent=5 // pred_check
        %p1116 = pneg %p1115
      $region62: #{tpu_custom_call.1} parent=5 // pred_check_branch
        %1118 = sbr.rel (%p1116) target = $region64
      $region63: #{tpu_custom_call.1} parent=5 // pred_region
        %s1119 = ssub.s32 %s18, 2
        // Predicated region
        $region65: #{tpu_custom_call.1} parent=63 // pred_check
          %p1120 = pneg %p241
        $region66: #{tpu_custom_call.1} parent=63 // pred_check_branch
          %1122 = sbr.rel (%p1120) target = $region68
        $region67: #{tpu_custom_call.1} parent=63 // pred_region
          %s1123 = sand.u32 %s226, 1
          %s1124 = scalar_lea.sflag [#allocation3], %s1123
          %s1125 = sand.u32 %s226, 1
          %s1126 = smul.addr %s1125, 32
          %s1127 = scalar_lea.vmem [#allocation2], %s1126
          %1128 = dma.done %s1124, 512
        $region68: #{tpu_custom_call.1} parent=63 // pred_fallthru
          _
      $region64: #{tpu_custom_call.1} parent=5 // pred_fallthru
        _
    $region6: #{tpu_custom_call.1} parent=1 // loop_footer
      %s22 = sadd.s32 1, %s18
    $region7: #{tpu_custom_call.1} parent=1 // loop_footer_branch
      %17 = sbr.rel target = $region3
    $region8: #{tpu_custom_call.1} parent=1 // loop_exit
      _
    %1129 = vsyncpa [#allocation3], 1
    %s1130 = scalar_lea.sflag [#allocation3], 1
    %1131 = vsyncpa %s1130, 1

</llo_original>
